<compile_context>
chip_gen: v5e
topology: v5e:2x2
jax: 0.10.0
libtpu: 0.0.40
codegen_flags: <defaults>
</compile_context>

<pallas_src>
import jax
import jax.numpy as jnp
from jax.experimental import pallas as pl
from jax.experimental.pallas import tpu as pltpu

DIM = 256          # fixed by the module (self.dim = 256)
BN_EPS = 1e-5


def _bn_relu_conv1x1_kernel(x_ref, scale_ref, shift_ref, w_ref, b_ref, o_ref):
    # x_ref:     (Cin, THW)   NCHW slab tile: channels on sublanes, spatial on lanes
    # scale_ref: (Cin, 1)     folded BN scale = gamma / sqrt(var + eps)   (f32)
    # shift_ref: (Cin, 1)     folded BN shift = beta - mean * scale       (f32)
    # w_ref:     (Cout, Cin)  1x1 conv weight, bf16 (MXU-native dtype)
    # b_ref:     (Cout, 1)    conv bias (f32)
    # o_ref:     (Cout, THW)
    x = x_ref[...].astype(jnp.float32)
    # BN + ReLU in f32 on the VPU; per-channel params broadcast along lanes.
    h = jnp.maximum(x * scale_ref[...] + shift_ref[...], 0.0)
    # 1x1 conv on the MXU: bf16 operands, f32 accumulation.
    y = jnp.dot(w_ref[...], h.astype(jnp.bfloat16),
                preferred_element_type=jnp.float32)
    o_ref[...] = (y + b_ref[...]).astype(o_ref.dtype)


def _pick_spatial_tile(n, hw, cap=4096):
    """Pick the spatial (lane) tile size.

    * If HW fits under the cap and is lane-aligned, use HW exactly: one
      fully contiguous DMA per image, unmasked lane-dense stores.
    * Otherwise use the largest multiple-of-128 tile <= cap.
    * Prefer an even total grid-step count (v7x megacore: 2 TCs share the
      grid) but never shrink the tile below 1024 lanes - tiny tiles inflate
      per-step overhead and shrink DMA rows.
    """
    if hw <= cap and hw % 128 == 0:
        thw = hw
    else:
        thw = min(((hw + 127) // 128) * 128, cap)

    def steps(t):
        return n * pl.cdiv(hw, t)

    while (steps(thw) < 2 or steps(thw) % 2 == 1) and thw > 1024 and thw % 256 == 0:
        thw //= 2
    return thw


def lower_sub4_forward(x_nchw, params, *, thw=None):
    """x_nchw: (N, 256, H, W) -> (N, 256, H, W).

    Output dtype follows the input.  For best performance feed bf16
    activations (halves HBM traffic on this bandwidth-bound op); BN/ReLU math
    and matmul accumulation stay in f32 inside the kernel either way.
    """
    N, C, H, W = x_nchw.shape
    assert C == DIM
    HW = H * W
    if thw is None:
        thw = _pick_spatial_tile(N, HW)

    out_dtype = x_nchw.dtype

    # Fold BN (eval mode / running stats) into per-channel scale/shift.
    scale = params["bn_gamma"] / jnp.sqrt(params["bn_running_var"] + BN_EPS)
    shift = params["bn_beta"] - params["bn_running_mean"] * scale
    scale = scale.reshape(C, 1).astype(jnp.float32)
    shift = shift.reshape(C, 1).astype(jnp.float32)

    # Conv2d weight (Cout, Cin, 1, 1) -> (Cout, Cin), pre-cast to bf16 once.
    w = params["conv_weight"].reshape(DIM, DIM).astype(jnp.bfloat16)
    b = params["conv_bias"].reshape(DIM, 1).astype(jnp.float32)

    # NCHW -> (N*C, H*W): contiguity-preserving reshape, no HBM transpose,
    # no dtype cast (the kernel upcasts on load).
    x_slab = x_nchw.reshape(N * C, HW)

    grid = (N, pl.cdiv(HW, thw))

    # VMEM budget: double-buffered x + out tiles, plus f32 intermediates of
    # the (C, thw) block inside the body, plus the resident constants.
    in_sz = jnp.dtype(x_nchw.dtype).itemsize
    out_sz = jnp.dtype(out_dtype).itemsize
    est_bytes = C * thw * (2 * in_sz + 2 * out_sz + 3 * 4) + (2 << 20)
    vmem_limit = int(min(max(est_bytes, 32 << 20), 48 << 20))

    const_spec = lambda shape: pl.BlockSpec(
        shape, lambda n, j: (0, 0), pipeline_mode=pl.Buffered(1))

    out_slab = pl.pallas_call(
        _bn_relu_conv1x1_kernel,
        out_shape=jax.ShapeDtypeStruct((N * DIM, HW), out_dtype),
        grid_spec=pltpu.PrefetchScalarGridSpec(
            num_scalar_prefetch=0,
            grid=grid,
            in_specs=[
                pl.BlockSpec((C, thw), lambda n, j: (n, j)),   # x tile
                const_spec((C, 1)),                            # bn scale
                const_spec((C, 1)),                            # bn shift
                const_spec((DIM, DIM)),                        # conv weight
                const_spec((DIM, 1)),                          # conv bias
            ],
            out_specs=pl.BlockSpec((DIM, thw), lambda n, j: (n, j)),
        ),
        compiler_params=pltpu.CompilerParams(
            dimension_semantics=("parallel", "parallel"),
            vmem_limit_bytes=vmem_limit),
    )(x_slab, scale, shift, w, b)

    # (N*C, HW) -> NCHW: free reshape, no transpose.
    return out_slab.reshape(N, DIM, H, W)


def init_params(key):
    k1, k2, k3, k4, k5 = jax.random.split(key, 5)
    return {
        "bn_gamma": jax.random.normal(k1, (DIM,), jnp.float32) * 0.1 + 1.0,
        "bn_beta": jax.random.normal(k2, (DIM,), jnp.float32) * 0.1,
        "bn_running_mean": jax.random.normal(k3, (DIM,), jnp.float32) * 0.1,
        "bn_running_var": jnp.abs(jax.random.normal(k4, (DIM,), jnp.float32)) * 0.1 + 1.0,
        "conv_weight": jax.random.normal(k5, (DIM, DIM, 1, 1), jnp.float32)
                       * (1.0 / jnp.sqrt(DIM)),
        "conv_bias": jnp.zeros((DIM,), jnp.float32),
    }


def _reference(x_nchw, params):
    x = x_nchw.astype(jnp.float32)
    scale = params["bn_gamma"] / jnp.sqrt(params["bn_running_var"] + BN_EPS)
    shift = params["bn_beta"] - params["bn_running_mean"] * scale
    h = jnp.maximum(x * scale[None, :, None, None] + shift[None, :, None, None], 0.0)
    w = params["conv_weight"].reshape(DIM, DIM)
    y = jnp.einsum("nchw,oc->nohw", h, w) + params["conv_bias"][None, :, None, None]
    return y


if __name__ == "__main__":
    key = jax.random.PRNGKey(0)
    kp, kx = jax.random.split(key)
    params = init_params(kp)

    # Channels are fixed at 256 by the module; small batch/spatial for the demo.
    # bf16 activations at the boundary: the op is HBM-bandwidth-bound, so
    # bf16 I/O is the preferred (and tested) fast path.
    x = jax.random.normal(kx, (2, DIM, 16, 16), jnp.float32).astype(jnp.bfloat16)

    out = lower_sub4_forward(x, params)
    out = jax.block_until_ready(out)

    ref = _reference(x, params)
    assert out.shape == (2, DIM, 16, 16)
    assert out.dtype == x.dtype
    # bf16 inputs, bf16 MXU operands (f32 accumulation) and a bf16 output
    # store vs an f32 reference: errors are O(1e-2) absolute at K=256.
    assert jnp.allclose(out.astype(jnp.float32), ref, atol=5e-2, rtol=5e-2), \
        "mismatch vs reference"

    print("KERNEL_OK")
</pallas_src>

<mosaic_0001>
module attributes {stable_mosaic.version = 11 : i64} {
  func.func @_bn_relu_conv1x1_kernel(%arg0: i32, %arg1: i32, %arg2: memref<256x256xbf16, #tpu.memory_space<vmem>>, %arg3: memref<256x1xf32, #tpu.memory_space<vmem>>, %arg4: memref<256x1xf32, #tpu.memory_space<vmem>>, %arg5: memref<256x256xbf16, #tpu.memory_space<vmem>>, %arg6: memref<256x1xf32, #tpu.memory_space<vmem>>, %arg7: memref<256x256xbf16, #tpu.memory_space<vmem>>) attributes {dimension_semantics = [#tpu.dimension_semantics<parallel>, #tpu.dimension_semantics<parallel>], iteration_bounds = array<i64: 2, 1>, scalar_prefetch = 0 : i64, scratch_operands = 0 : i64, tpu.core_type = #tpu.core_type<tc>, window_params = [{transform_indices = @transform_0, window_bounds = array<i64: 256, 256>}, {pipeline_mode = #tpu.pipeline_mode<synchronous>, transform_indices = @transform_1, window_bounds = array<i64: 256, 1>}, {pipeline_mode = #tpu.pipeline_mode<synchronous>, transform_indices = @transform_2, window_bounds = array<i64: 256, 1>}, {pipeline_mode = #tpu.pipeline_mode<synchronous>, transform_indices = @transform_3, window_bounds = array<i64: 256, 256>}, {pipeline_mode = #tpu.pipeline_mode<synchronous>, transform_indices = @transform_4, window_bounds = array<i64: 256, 1>}, {transform_indices = @transform_5, window_bounds = array<i64: 256, 256>}]} {
    %c0 = arith.constant 0 : index
    %c0_0 = arith.constant 0 : index
    %0 = vector.load %arg2[%c0, %c0_0] : memref<256x256xbf16, #tpu.memory_space<vmem>>, vector<256x256xbf16>
    %1 = arith.extf %0 : vector<256x256xbf16> to vector<256x256xf32>
    %c0_1 = arith.constant 0 : index
    %c0_2 = arith.constant 0 : index
    %2 = vector.load %arg3[%c0_1, %c0_2] : memref<256x1xf32, #tpu.memory_space<vmem>>, vector<256x1xf32>
    %3 = vector.broadcast %2 : vector<256x1xf32> to vector<256x256xf32>
    %4 = arith.mulf %1, %3 : vector<256x256xf32>
    %c0_3 = arith.constant 0 : index
    %c0_4 = arith.constant 0 : index
    %5 = vector.load %arg4[%c0_3, %c0_4] : memref<256x1xf32, #tpu.memory_space<vmem>>, vector<256x1xf32>
    %6 = vector.broadcast %5 : vector<256x1xf32> to vector<256x256xf32>
    %7 = arith.addf %4, %6 : vector<256x256xf32>
    %cst = arith.constant 0.000000e+00 : f32
    %8 = vector.broadcast %cst : f32 to vector<256x256xf32>
    %9 = arith.maximumf %7, %8 : vector<256x256xf32>
    %c0_5 = arith.constant 0 : index
    %c0_6 = arith.constant 0 : index
    %10 = vector.load %arg5[%c0_5, %c0_6] : memref<256x256xbf16, #tpu.memory_space<vmem>>, vector<256x256xbf16>
    %11 = arith.truncf %9 : vector<256x256xf32> to vector<256x256xbf16>
    %cst_7 = arith.constant dense<0.000000e+00> : vector<256x256xf32>
    %12 = tpu.matmul %10, %11, %cst_7 {dimension_numbers = #tpu.dot_dimension_numbers<[1], [0], [0], [1], [0, 0, 1, 1], [], []>} : vector<256x256xbf16>, vector<256x256xbf16>, vector<256x256xf32> -> vector<256x256xf32>
    %c0_8 = arith.constant 0 : index
    %c0_9 = arith.constant 0 : index
    %13 = vector.load %arg6[%c0_8, %c0_9] : memref<256x1xf32, #tpu.memory_space<vmem>>, vector<256x1xf32>
    %14 = vector.broadcast %13 : vector<256x1xf32> to vector<256x256xf32>
    %15 = arith.addf %12, %14 : vector<256x256xf32>
    %16 = arith.truncf %15 : vector<256x256xf32> to vector<256x256xbf16>
    %c0_10 = arith.constant 0 : index
    %c0_11 = arith.constant 0 : index
    %17 = vector.load %arg7[%c0_10, %c0_11] : memref<256x256xbf16, #tpu.memory_space<vmem>>, vector<256x256xbf16>
    tpu.vector_store %arg7[%c0_10, %c0_11], %16 {strides = array<i32>} : memref<256x256xbf16, #tpu.memory_space<vmem>>, vector<256x256xbf16>,
    return
  }
  func.func @transform_0(%arg0: i32, %arg1: i32) -> (i32, i32) {
    %c0_i32 = arith.constant 0 : i32
    return %arg0, %arg1 : i32, i32
  }
  func.func @transform_1(%arg0: i32, %arg1: i32) -> (i32, i32) {
    %c0_i32 = arith.constant 0 : i32
    %c0_i32_0 = arith.constant 0 : i32
    %c0_i32_1 = arith.constant 0 : i32
    return %c0_i32, %c0_i32_0 : i32, i32
  }
  func.func @transform_2(%arg0: i32, %arg1: i32) -> (i32, i32) {
    %c0_i32 = arith.constant 0 : i32
    %c0_i32_0 = arith.constant 0 : i32
    %c0_i32_1 = arith.constant 0 : i32
    return %c0_i32, %c0_i32_0 : i32, i32
  }
  func.func @transform_3(%arg0: i32, %arg1: i32) -> (i32, i32) {
    %c0_i32 = arith.constant 0 : i32
    %c0_i32_0 = arith.constant 0 : i32
    %c0_i32_1 = arith.constant 0 : i32
    return %c0_i32, %c0_i32_0 : i32, i32
  }
  func.func @transform_4(%arg0: i32, %arg1: i32) -> (i32, i32) {
    %c0_i32 = arith.constant 0 : i32
    %c0_i32_0 = arith.constant 0 : i32
    %c0_i32_1 = arith.constant 0 : i32
    return %c0_i32, %c0_i32_0 : i32, i32
  }
  func.func @transform_5(%arg0: i32, %arg1: i32) -> (i32, i32) {
    %c0_i32 = arith.constant 0 : i32
    return %arg0, %arg1 : i32, i32
  }
}

</mosaic_0001>

<llo_original>
// kernel: tpu_custom_call.1
$region0: #{tpu_custom_call.1}
  #allocation0 [shape = 'u32[]', space=smem, size = 0x4, offset = 0x4, fixed_abs, tag = 'smem constant byte address 0x4 - core index']
  #allocation1 [shape = 'u32[72,128]{1,0:T(1,128)}', space=vmem, size = 0x9000, scoped, tag = 'internal scratch']
  %s0 = inlined_call_operand.vmem [shape: bf16[512,256], index: 0, kind: input, shape index: {}]
  %s1 = inlined_call_operand.vmem [shape: f32[256,1], index: 1, kind: input, shape index: {}]
  %s2 = inlined_call_operand.vmem [shape: f32[256,1], index: 2, kind: input, shape index: {}]
  %s3 = inlined_call_operand.vmem [shape: bf16[256,256], index: 3, kind: input, shape index: {}]
  %s4 = inlined_call_operand.vmem [shape: f32[256,1], index: 4, kind: input, shape index: {}]
  %s5 = inlined_call_operand.hbm [shape: bf16[512,256], index: 5, kind: output, shape index: {}]
  %s6 = sld [smem:[#allocation0]]
  $region53: #{tpu_custom_call.1} parent=0
    _
  %s8 = ssub.s32 1, %s6
  %s9 = scalar_select 0, %s8, %s6
  $region1: #{tpu_custom_call.1} parent=0
    #allocation2 [shape = 'u8[262144]{0}', space=vmem, size = 0x40000, scoped, tag = 'output window, operand 0']
    #allocation3 [shape = 's32[2]{0}', space=sflag, size = 0x8, scoped, tag = 'scoped memory for tpu_custom_call.1']
    %10 = vsyncpa [#allocation3], 0
    %s11 = scalar_lea.sflag [#allocation3], 1
    %12 = vsyncpa %s11, 0
    loop: start=0, step=1, limit=4
    $region2: #{tpu_custom_call.1} parent=1 // loop_pre_header
      _
    $region3: #{tpu_custom_call.1} parent=1 // loop_header
      %s14 = sphi 0, %s18
      %p15 = scmp.ge.s32.totalorder %s14, 4
      %s21 = sphi 0, %s33
      %s22 = sphi 0, %s29
      %s23 = sphi 0, %s21
      %s24 = sphi 0, %s22
      %s25 = sphi 0, %s23
      %s26 = sphi 0, %s24
      %s38 = sphi 0, %s40
      %s41 = sphi 0, %s38
      %s42 = sphi 0, %s41
      %s58 = sphi 0, %s42
      %s62 = sphi 0, %s62
      %s64 = sphi 0, %s62
      %s65 = sphi 0, %s64
      %s79 = sphi 0, %s65
      %s83 = sphi 0, %s83
      %s85 = sphi 0, %s83
      %s86 = sphi 0, %s85
      %s100 = sphi 0, %s86
      %s104 = sphi 0, %s104
      %s106 = sphi 0, %s104
      %s107 = sphi 0, %s106
      %s121 = sphi 0, %s107
      %s125 = sphi 0, %s125
      %s127 = sphi 0, %s125
      %s128 = sphi 0, %s127
      %s142 = sphi 0, %s128
      %s150 = sphi 0, %s152
      %s153 = sphi 0, %s150
      %s154 = sphi 0, %s153
      %s170 = sphi 0, %s154
    $region4: #{tpu_custom_call.1} parent=1 // loop_header_branch
      %17 = sbr.rel (%p15) target = $region8
    $region5: #{tpu_custom_call.1} parent=1 // loop_body
      %s19 = ssub.s32 %s14, 1
      %s20 = ssub.s32 %s14, 2
      %s27 = sadd.s32 1, %s22
      %p28 = scmp.ge.s32.totalorder %s27, 1
      %s29 = scalar_select %p28, 0, %s27
      %s30 = sadd.s32 1, %s21
      %s31 = scalar_select %p28, %s30, %s21
      %p32 = scmp.ge.s32.totalorder %s31, 2
      %s33 = scalar_select %p32, 0, %s31
      %s34 = ssub.s32 %s21, %s33
      %s35 = ssub.s32 %s22, %s29
      %s36 = sor.u32 %s34, %s35
      %p37 = scmp.eq.s32.totalorder %s36, 0
      %s39 = sadd.s32 %s38, 1
      %s40 = scalar_select %p37, %s38, %s39
      %p43 = pneg %p37
      %p44 = scmp.eq.s32.totalorder %s14, 1
      %p45 = por %p43, %p44
      %p46 = scmp.ne.s32.totalorder %s38, %s41
      %p47 = scmp.eq.s32.totalorder %s14, 0
      %p48 = por %p46, %p47
      %p49 = scmp.ne.s32.totalorder %s38, %s41
      %p50 = scmp.eq.s32.totalorder %s19, 1
      %p51 = por %p49, %p50
      %p52 = scmp.ne.s32.totalorder %s41, %s42
      %p53 = scmp.eq.s32.totalorder %s19, 0
      %p54 = por %p52, %p53
      %p55 = scmp.ne.s32.totalorder %s41, %s42
      %p56 = scmp.eq.s32.totalorder %s20, 1
      %p57 = por %p55, %p56
      %p59 = scmp.ne.s32.totalorder %s42, %s58
      %p60 = scmp.eq.s32.totalorder %s20, 0
      %p61 = por %p59, %p60
      %s63 = sadd.s32 %s62, 1
      %p66 = scmp.eq.s32.totalorder %s14, 1
      %p67 = scmp.ne.s32.totalorder %s62, %s64
      %p68 = scmp.eq.s32.totalorder %s14, 0
      %p69 = por %p67, %p68
      %p70 = scmp.ne.s32.totalorder %s62, %s64
      %p71 = scmp.eq.s32.totalorder %s19, 1
      %p72 = por %p70, %p71
      %p73 = scmp.ne.s32.totalorder %s64, %s65
      %p74 = scmp.eq.s32.totalorder %s19, 0
      %p75 = por %p73, %p74
      %p76 = scmp.ne.s32.totalorder %s64, %s65
      %p77 = scmp.eq.s32.totalorder %s20, 1
      %p78 = por %p76, %p77
      %p80 = scmp.ne.s32.totalorder %s65, %s79
      %p81 = scmp.eq.s32.totalorder %s20, 0
      %p82 = por %p80, %p81
      %s84 = sadd.s32 %s83, 1
      %p87 = scmp.eq.s32.totalorder %s14, 1
      %p88 = scmp.ne.s32.totalorder %s83, %s85
      %p89 = scmp.eq.s32.totalorder %s14, 0
      %p90 = por %p88, %p89
      %p91 = scmp.ne.s32.totalorder %s83, %s85
      %p92 = scmp.eq.s32.totalorder %s19, 1
      %p93 = por %p91, %p92
      %p94 = scmp.ne.s32.totalorder %s85, %s86
      %p95 = scmp.eq.s32.totalorder %s19, 0
      %p96 = por %p94, %p95
      %p97 = scmp.ne.s32.totalorder %s85, %s86
      %p98 = scmp.eq.s32.totalorder %s20, 1
      %p99 = por %p97, %p98
      %p101 = scmp.ne.s32.totalorder %s86, %s100
      %p102 = scmp.eq.s32.totalorder %s20, 0
      %p103 = por %p101, %p102
      %s105 = sadd.s32 %s104, 1
      %p108 = scmp.eq.s32.totalorder %s14, 1
      %p109 = scmp.ne.s32.totalorder %s104, %s106
      %p110 = scmp.eq.s32.totalorder %s14, 0
      %p111 = por %p109, %p110
      %p112 = scmp.ne.s32.totalorder %s104, %s106
      %p113 = scmp.eq.s32.totalorder %s19, 1
      %p114 = por %p112, %p113
      %p115 = scmp.ne.s32.totalorder %s106, %s107
      %p116 = scmp.eq.s32.totalorder %s19, 0
      %p117 = por %p115, %p116
      %p118 = scmp.ne.s32.totalorder %s106, %s107
      %p119 = scmp.eq.s32.totalorder %s20, 1
      %p120 = por %p118, %p119
      %p122 = scmp.ne.s32.totalorder %s107, %s121
      %p123 = scmp.eq.s32.totalorder %s20, 0
      %p124 = por %p122, %p123
      %s126 = sadd.s32 %s125, 1
      %p129 = scmp.eq.s32.totalorder %s14, 1
      %p130 = scmp.ne.s32.totalorder %s125, %s127
      %p131 = scmp.eq.s32.totalorder %s14, 0
      %p132 = por %p130, %p131
      %p133 = scmp.ne.s32.totalorder %s125, %s127
      %p134 = scmp.eq.s32.totalorder %s19, 1
      %p135 = por %p133, %p134
      %p136 = scmp.ne.s32.totalorder %s127, %s128
      %p137 = scmp.eq.s32.totalorder %s19, 0
      %p138 = por %p136, %p137
      %p139 = scmp.ne.s32.totalorder %s127, %s128
      %p140 = scmp.eq.s32.totalorder %s20, 1
      %p141 = por %p139, %p140
      %p143 = scmp.ne.s32.totalorder %s128, %s142
      %p144 = scmp.eq.s32.totalorder %s20, 0
      %p145 = por %p143, %p144
      %s146 = ssub.s32 %s21, %s33
      %s147 = ssub.s32 %s22, %s29
      %s148 = sor.u32 %s146, %s147
      %p149 = scmp.eq.s32.totalorder %s148, 0
      %s151 = sadd.s32 %s150, 1
      %s152 = scalar_select %p149, %s150, %s151
      %p155 = pneg %p149
      %p156 = scmp.eq.s32.totalorder %s14, 1
      %p157 = por %p155, %p156
      %p158 = scmp.ne.s32.totalorder %s150, %s153
      %p159 = scmp.eq.s32.totalorder %s14, 0
      %p160 = por %p158, %p159
      %p161 = scmp.ne.s32.totalorder %s150, %s153
      %p162 = scmp.eq.s32.totalorder %s19, 1
      %p163 = por %p161, %p162
      %p164 = scmp.ne.s32.totalorder %s153, %s154
      %p165 = scmp.eq.s32.totalorder %s19, 0
      %p166 = por %p164, %p165
      %p167 = scmp.ne.s32.totalorder %s153, %s154
      %p168 = scmp.eq.s32.totalorder %s20, 1
      %p169 = por %p167, %p168
      %p171 = scmp.ne.s32.totalorder %s154, %s170
      %p172 = scmp.eq.s32.totalorder %s20, 0
      %p173 = por %p171, %p172
      %p174 = scmp.le.s32.totalorder 1, %s14
      %p175 = scmp.lt.s32.totalorder %s14, 3
      %p176 = pnand %p174, %p175
      %p177 = pneg %p176
      // Predicated region
      $region9: #{tpu_custom_call.1} parent=5 // pred_check
        _
      $region10: #{tpu_custom_call.1} parent=5 // pred_check_branch
        %179 = sbr.rel (%p176) target = $region12
      $region11: #{tpu_custom_call.1} parent=5 // pred_region
        %s180 = ssub.s32 %s14, 1
        // Predicated region
        $region13: #{tpu_custom_call.1} parent=11 // pred_check
          %p181 = pneg %p75
        $region14: #{tpu_custom_call.1} parent=11 // pred_check_branch
          %183 = sbr.rel (%p181) target = $region16
        $region15: #{tpu_custom_call.1} parent=11 // pred_region
          _
        $region16: #{tpu_custom_call.1} parent=11 // pred_fallthru
          _
        // Predicated region
        $region17: #{tpu_custom_call.1} parent=11 // pred_check
          %p184 = pneg %p96
        $region18: #{tpu_custom_call.1} parent=11 // pred_check_branch
          %186 = sbr.rel (%p184) target = $region20
        $region19: #{tpu_custom_call.1} parent=11 // pred_region
          _
        $region20: #{tpu_custom_call.1} parent=11 // pred_fallthru
          _
        // Predicated region
        $region21: #{tpu_custom_call.1} parent=11 // pred_check
          %p187 = pneg %p117
        $region22: #{tpu_custom_call.1} parent=11 // pred_check_branch
          %189 = sbr.rel (%p187) target = $region24
        $region23: #{tpu_custom_call.1} parent=11 // pred_region
          _
        $region24: #{tpu_custom_call.1} parent=11 // pred_fallthru
          _
        // Predicated region
        $region25: #{tpu_custom_call.1} parent=11 // pred_check
          %p190 = pneg %p138
        $region26: #{tpu_custom_call.1} parent=11 // pred_check_branch
          %192 = sbr.rel (%p190) target = $region28
        $region27: #{tpu_custom_call.1} parent=11 // pred_region
          _
        $region28: #{tpu_custom_call.1} parent=11 // pred_fallthru
          _
      $region12: #{tpu_custom_call.1} parent=5 // pred_fallthru
        _
      %p193 = scmp.lt.s32.totalorder %s14, 2
      // Predicated region
      $region29: #{tpu_custom_call.1} parent=5 // pred_check
        %p194 = pneg %p193
      $region30: #{tpu_custom_call.1} parent=5 // pred_check_branch
        %196 = sbr.rel (%p194) target = $region32
      $region31: #{tpu_custom_call.1} parent=5 // pred_region
        // Predicated region
        $region33: #{tpu_custom_call.1} parent=31 // pred_check
          %p197 = pneg %p48
        $region34: #{tpu_custom_call.1} parent=31 // pred_check_branch
          %199 = sbr.rel (%p197) target = $region36
        $region35: #{tpu_custom_call.1} parent=31 // pred_region
          %s200 = smul.u32 32, %s21
          %s201 = smul.u32 2, %s22
          %p202 = scmp.lt.s32.totalorder %s200, 63
          %s203 = scalar_select %p202, %s200, 63
          %p204 = scmp.lt.s32.totalorder %s201, 1
          %s205 = scalar_select %p204, %s201, 1
          %s206 = smul.addr %s203, 2
          %s207 = sadd.s32 %s205, %s206
          %s208 = smul.addr %s207, 4
          %s209 = scalar_lea.vmem %s0, %s208
          %s210 = smul.u32 32, %s21
          %s211 = smul.u32 2, %s22
        $region36: #{tpu_custom_call.1} parent=31 // pred_fallthru
          _
      $region32: #{tpu_custom_call.1} parent=5 // pred_fallthru
        _
      %p212 = scmp.le.s32.totalorder 1, %s14
      %p213 = scmp.lt.s32.totalorder %s14, 3
      %p214 = pnand %p212, %p213
      %p215 = pneg %p214
      // Predicated region
      $region37: #{tpu_custom_call.1} parent=5 // pred_check
        _
      $region38: #{tpu_custom_call.1} parent=5 // pred_check_branch
        %217 = sbr.rel (%p214) target = $region40
      $region39: #{tpu_custom_call.1} parent=5 // pred_region
        %s218 = ssub.s32 %s14, 1
        %s219 = smul.u32 32, %s23
        %s220 = smul.u32 2, %s24
        %p221 = scmp.lt.s32.totalorder %s219, 63
        %s222 = scalar_select %p221, %s219, 63
        %p223 = scmp.lt.s32.totalorder %s220, 1
        %s224 = scalar_select %p223, %s220, 1
        %s225 = smul.addr %s222, 2
        %s226 = sadd.s32 %s224, %s225
        %s227 = smul.addr %s226, 4
        %s228 = scalar_lea.vmem %s0, %s227
        %p229 = pneg %p54
        %p230 = pneg %p51
        %p231 = pneg %p75
        %p232 = pneg %p72
        %p233 = pneg %p96
        %p234 = pneg %p93
        %p235 = pneg %p117
        %p236 = pneg %p114
        %p237 = pneg %p138
        %p238 = pneg %p135
        %p239 = pneg %p166
        %p240 = pneg %p163
        %s241 = sand.u32 %s153, 1
        %s242 = scalar_lea.sflag [#allocation3], %s241
        %s243 = sand.u32 %s153, 1
        %s244 = smul.addr %s243, 256
        %s245 = scalar_lea.vmem [#allocation2], %s244
        %s246 = smul.u32 32, %s23
        %s247 = smul.u32 2, %s24
        %p248 = scmp.lt.s32.totalorder %s246, 63
        %s249 = scalar_select %p248, %s246, 63
        %p250 = scmp.lt.s32.totalorder %s247, 1
        %s251 = scalar_select %p250, %s247, 1
        %s252 = smul.addr %s249, 2
        %s253 = sadd.s32 %s251, %s252
        %s254 = smul.addr %s253, 4
        %s255 = scalar_lea.vmem %s0, %s254
        %s256 = smul.u32 32, %s23
        %s257 = smul.u32 2, %s24
        %s258 = smul.u32 32, %s23
        %s259 = smul.u32 2, %s24
        %v260 = vld [vmem:[%s255] sm:$0xff]
        %v261 = vld [vmem:[%s255 + $0x8] sm:$0xff]
        %v262 = vld [vmem:[%s255 + $0x10] sm:$0xff]
        %v263 = vld [vmem:[%s255 + $0x18] sm:$0xff]
        %v264 = vld [vmem:[%s255 + $0x20] sm:$0xff]
        %v265 = vld [vmem:[%s255 + $0x28] sm:$0xff]
        %v266 = vld [vmem:[%s255 + $0x30] sm:$0xff]
        %v267 = vld [vmem:[%s255 + $0x38] sm:$0xff]
        %v268 = vld [vmem:[%s255 + $0x40] sm:$0xff]
        %v269 = vld [vmem:[%s255 + $0x48] sm:$0xff]
        %v270 = vld [vmem:[%s255 + $0x50] sm:$0xff]
        %v271 = vld [vmem:[%s255 + $0x58] sm:$0xff]
        %v272 = vld [vmem:[%s255 + $0x60] sm:$0xff]
        %v273 = vld [vmem:[%s255 + $0x68] sm:$0xff]
        %v274 = vld [vmem:[%s255 + $0x70] sm:$0xff]
        %v275 = vld [vmem:[%s255 + $0x78] sm:$0xff]
        %v276 = vld [vmem:[%s255 + $0x80] sm:$0xff]
        %v277 = vld [vmem:[%s255 + $0x88] sm:$0xff]
        %v278 = vld [vmem:[%s255 + $0x90] sm:$0xff]
        %v279 = vld [vmem:[%s255 + $0x98] sm:$0xff]
        %v280 = vld [vmem:[%s255 + $0xa0] sm:$0xff]
        %v281 = vld [vmem:[%s255 + $0xa8] sm:$0xff]
        %v282 = vld [vmem:[%s255 + $0xb0] sm:$0xff]
        %v283 = vld [vmem:[%s255 + $0xb8] sm:$0xff]
        %v284 = vld [vmem:[%s255 + $0xc0] sm:$0xff]
        %v285 = vld [vmem:[%s255 + $0xc8] sm:$0xff]
        %v286 = vld [vmem:[%s255 + $0xd0] sm:$0xff]
        %v287 = vld [vmem:[%s255 + $0xd8] sm:$0xff]
        %v288 = vld [vmem:[%s255 + $0xe0] sm:$0xff]
        %v289 = vld [vmem:[%s255 + $0xe8] sm:$0xff]
        %v290 = vld [vmem:[%s255 + $0xf0] sm:$0xff]
        %v291 = vld [vmem:[%s255 + $0xf8] sm:$0xff]
        %v292 = vunpack.c.l.bf16 %v260
        %v293 = vunpack.c.h.bf16 %v260
        %v294 = vunpack.c.l.bf16 %v261
        %v295 = vunpack.c.h.bf16 %v261
        %v296 = vunpack.c.l.bf16 %v262
        %v297 = vunpack.c.h.bf16 %v262
        %v298 = vunpack.c.l.bf16 %v263
        %v299 = vunpack.c.h.bf16 %v263
        %v300 = vunpack.c.l.bf16 %v264
        %v301 = vunpack.c.h.bf16 %v264
        %v302 = vunpack.c.l.bf16 %v265
        %v303 = vunpack.c.h.bf16 %v265
        %v304 = vunpack.c.l.bf16 %v266
        %v305 = vunpack.c.h.bf16 %v266
        %v306 = vunpack.c.l.bf16 %v267
        %v307 = vunpack.c.h.bf16 %v267
        %v308 = vunpack.c.l.bf16 %v268
        %v309 = vunpack.c.h.bf16 %v268
        %v310 = vunpack.c.l.bf16 %v269
        %v311 = vunpack.c.h.bf16 %v269
        %v312 = vunpack.c.l.bf16 %v270
        %v313 = vunpack.c.h.bf16 %v270
        %v314 = vunpack.c.l.bf16 %v271
        %v315 = vunpack.c.h.bf16 %v271
        %v316 = vunpack.c.l.bf16 %v272
        %v317 = vunpack.c.h.bf16 %v272
        %v318 = vunpack.c.l.bf16 %v273
        %v319 = vunpack.c.h.bf16 %v273
        %v320 = vunpack.c.l.bf16 %v274
        %v321 = vunpack.c.h.bf16 %v274
        %v322 = vunpack.c.l.bf16 %v275
        %v323 = vunpack.c.h.bf16 %v275
        %v324 = vunpack.c.l.bf16 %v276
        %v325 = vunpack.c.h.bf16 %v276
        %v326 = vunpack.c.l.bf16 %v277
        %v327 = vunpack.c.h.bf16 %v277
        %v328 = vunpack.c.l.bf16 %v278
        %v329 = vunpack.c.h.bf16 %v278
        %v330 = vunpack.c.l.bf16 %v279
        %v331 = vunpack.c.h.bf16 %v279
        %v332 = vunpack.c.l.bf16 %v280
        %v333 = vunpack.c.h.bf16 %v280
        %v334 = vunpack.c.l.bf16 %v281
        %v335 = vunpack.c.h.bf16 %v281
        %v336 = vunpack.c.l.bf16 %v282
        %v337 = vunpack.c.h.bf16 %v282
        %v338 = vunpack.c.l.bf16 %v283
        %v339 = vunpack.c.h.bf16 %v283
        %v340 = vunpack.c.l.bf16 %v284
        %v341 = vunpack.c.h.bf16 %v284
        %v342 = vunpack.c.l.bf16 %v285
        %v343 = vunpack.c.h.bf16 %v285
        %v344 = vunpack.c.l.bf16 %v286
        %v345 = vunpack.c.h.bf16 %v286
        %v346 = vunpack.c.l.bf16 %v287
        %v347 = vunpack.c.h.bf16 %v287
        %v348 = vunpack.c.l.bf16 %v288
        %v349 = vunpack.c.h.bf16 %v288
        %v350 = vunpack.c.l.bf16 %v289
        %v351 = vunpack.c.h.bf16 %v289
        %v352 = vunpack.c.l.bf16 %v290
        %v353 = vunpack.c.h.bf16 %v290
        %v354 = vunpack.c.l.bf16 %v291
        %v355 = vunpack.c.h.bf16 %v291
        %v356 = vld [vmem:[%s1] sm:$0xff]
        %v357 = vld [vmem:[%s1 + $0x8] sm:$0xff]
        %v358 = vld [vmem:[%s1 + $0x10] sm:$0xff]
        %v359 = vld [vmem:[%s1 + $0x18] sm:$0xff]
        %v360 = vld [vmem:[%s1 + $0x20] sm:$0xff]
        %v361 = vld [vmem:[%s1 + $0x28] sm:$0xff]
        %v362 = vld [vmem:[%s1 + $0x30] sm:$0xff]
        %v363 = vld [vmem:[%s1 + $0x38] sm:$0xff]
        %v364 = vld [vmem:[%s1 + $0x40] sm:$0xff]
        %v365 = vld [vmem:[%s1 + $0x48] sm:$0xff]
        %v366 = vld [vmem:[%s1 + $0x50] sm:$0xff]
        %v367 = vld [vmem:[%s1 + $0x58] sm:$0xff]
        %v368 = vld [vmem:[%s1 + $0x60] sm:$0xff]
        %v369 = vld [vmem:[%s1 + $0x68] sm:$0xff]
        %v370 = vld [vmem:[%s1 + $0x70] sm:$0xff]
        %v371 = vld [vmem:[%s1 + $0x78] sm:$0xff]
        %v372 = vld [vmem:[%s1 + $0x80] sm:$0xff]
        %v373 = vld [vmem:[%s1 + $0x88] sm:$0xff]
        %v374 = vld [vmem:[%s1 + $0x90] sm:$0xff]
        %v375 = vld [vmem:[%s1 + $0x98] sm:$0xff]
        %v376 = vld [vmem:[%s1 + $0xa0] sm:$0xff]
        %v377 = vld [vmem:[%s1 + $0xa8] sm:$0xff]
        %v378 = vld [vmem:[%s1 + $0xb0] sm:$0xff]
        %v379 = vld [vmem:[%s1 + $0xb8] sm:$0xff]
        %v380 = vld [vmem:[%s1 + $0xc0] sm:$0xff]
        %v381 = vld [vmem:[%s1 + $0xc8] sm:$0xff]
        %v382 = vld [vmem:[%s1 + $0xd0] sm:$0xff]
        %v383 = vld [vmem:[%s1 + $0xd8] sm:$0xff]
        %v384 = vld [vmem:[%s1 + $0xe0] sm:$0xff]
        %v385 = vld [vmem:[%s1 + $0xe8] sm:$0xff]
        %v386 = vld [vmem:[%s1 + $0xf0] sm:$0xff]
        %v387 = vld [vmem:[%s1 + $0xf8] sm:$0xff]
        %389 = vset.pattern.permute.xlu0 0
        %390 = vperm.xlu0 %389, %v356
        %v391 = vpop.permute.xlu0 %390
        %394 = vset.pattern.permute.xlu0 0
        %395 = vperm.xlu0 %394, %v357
        %v396 = vpop.permute.xlu0 %395
        %399 = vset.pattern.permute.xlu0 0
        %400 = vperm.xlu0 %399, %v358
        %v401 = vpop.permute.xlu0 %400
        %404 = vset.pattern.permute.xlu0 0
        %405 = vperm.xlu0 %404, %v359
        %v406 = vpop.permute.xlu0 %405
        %409 = vset.pattern.permute.xlu0 0
        %410 = vperm.xlu0 %409, %v360
        %v411 = vpop.permute.xlu0 %410
        %414 = vset.pattern.permute.xlu0 0
        %415 = vperm.xlu0 %414, %v361
        %v416 = vpop.permute.xlu0 %415
        %419 = vset.pattern.permute.xlu0 0
        %420 = vperm.xlu0 %419, %v362
        %v421 = vpop.permute.xlu0 %420
        %424 = vset.pattern.permute.xlu0 0
        %425 = vperm.xlu0 %424, %v363
        %v426 = vpop.permute.xlu0 %425
        %429 = vset.pattern.permute.xlu0 0
        %430 = vperm.xlu0 %429, %v364
        %v431 = vpop.permute.xlu0 %430
        %434 = vset.pattern.permute.xlu0 0
        %435 = vperm.xlu0 %434, %v365
        %v436 = vpop.permute.xlu0 %435
        %439 = vset.pattern.permute.xlu0 0
        %440 = vperm.xlu0 %439, %v366
        %v441 = vpop.permute.xlu0 %440
        %444 = vset.pattern.permute.xlu0 0
        %445 = vperm.xlu0 %444, %v367
        %v446 = vpop.permute.xlu0 %445
        %449 = vset.pattern.permute.xlu0 0
        %450 = vperm.xlu0 %449, %v368
        %v451 = vpop.permute.xlu0 %450
        %454 = vset.pattern.permute.xlu0 0
        %455 = vperm.xlu0 %454, %v369
        %v456 = vpop.permute.xlu0 %455
        %459 = vset.pattern.permute.xlu0 0
        %460 = vperm.xlu0 %459, %v370
        %v461 = vpop.permute.xlu0 %460
        %464 = vset.pattern.permute.xlu0 0
        %465 = vperm.xlu0 %464, %v371
        %v466 = vpop.permute.xlu0 %465
        %469 = vset.pattern.permute.xlu0 0
        %470 = vperm.xlu0 %469, %v372
        %v471 = vpop.permute.xlu0 %470
        %474 = vset.pattern.permute.xlu0 0
        %475 = vperm.xlu0 %474, %v373
        %v476 = vpop.permute.xlu0 %475
        %479 = vset.pattern.permute.xlu0 0
        %480 = vperm.xlu0 %479, %v374
        %v481 = vpop.permute.xlu0 %480
        %484 = vset.pattern.permute.xlu0 0
        %485 = vperm.xlu0 %484, %v375
        %v486 = vpop.permute.xlu0 %485
        %489 = vset.pattern.permute.xlu0 0
        %490 = vperm.xlu0 %489, %v376
        %v491 = vpop.permute.xlu0 %490
        %494 = vset.pattern.permute.xlu0 0
        %495 = vperm.xlu0 %494, %v377
        %v496 = vpop.permute.xlu0 %495
        %499 = vset.pattern.permute.xlu0 0
        %500 = vperm.xlu0 %499, %v378
        %v501 = vpop.permute.xlu0 %500
        %504 = vset.pattern.permute.xlu0 0
        %505 = vperm.xlu0 %504, %v379
        %v506 = vpop.permute.xlu0 %505
        %509 = vset.pattern.permute.xlu0 0
        %510 = vperm.xlu0 %509, %v380
        %v511 = vpop.permute.xlu0 %510
        %514 = vset.pattern.permute.xlu0 0
        %515 = vperm.xlu0 %514, %v381
        %v516 = vpop.permute.xlu0 %515
        %519 = vset.pattern.permute.xlu0 0
        %520 = vperm.xlu0 %519, %v382
        %v521 = vpop.permute.xlu0 %520
        %524 = vset.pattern.permute.xlu0 0
        %525 = vperm.xlu0 %524, %v383
        %v526 = vpop.permute.xlu0 %525
        %529 = vset.pattern.permute.xlu0 0
        %530 = vperm.xlu0 %529, %v384
        %v531 = vpop.permute.xlu0 %530
        %534 = vset.pattern.permute.xlu0 0
        %535 = vperm.xlu0 %534, %v385
        %v536 = vpop.permute.xlu0 %535
        %539 = vset.pattern.permute.xlu0 0
        %540 = vperm.xlu0 %539, %v386
        %v541 = vpop.permute.xlu0 %540
        %544 = vset.pattern.permute.xlu0 0
        %545 = vperm.xlu0 %544, %v387
        %v546 = vpop.permute.xlu0 %545
        %v548 = vmul.f32 %v292, %v391
        %v549 = vmul.f32 %v293, %v391
        %v550 = vmul.f32 %v294, %v396
        %v551 = vmul.f32 %v295, %v396
        %v552 = vmul.f32 %v296, %v401
        %v553 = vmul.f32 %v297, %v401
        %v554 = vmul.f32 %v298, %v406
        %v555 = vmul.f32 %v299, %v406
        %v556 = vmul.f32 %v300, %v411
        %v557 = vmul.f32 %v301, %v411
        %v558 = vmul.f32 %v302, %v416
        %v559 = vmul.f32 %v303, %v416
        %v560 = vmul.f32 %v304, %v421
        %v561 = vmul.f32 %v305, %v421
        %v562 = vmul.f32 %v306, %v426
        %v563 = vmul.f32 %v307, %v426
        %v564 = vmul.f32 %v308, %v431
        %v565 = vmul.f32 %v309, %v431
        %v566 = vmul.f32 %v310, %v436
        %v567 = vmul.f32 %v311, %v436
        %v568 = vmul.f32 %v312, %v441
        %v569 = vmul.f32 %v313, %v441
        %v570 = vmul.f32 %v314, %v446
        %v571 = vmul.f32 %v315, %v446
        %v572 = vmul.f32 %v316, %v451
        %v573 = vmul.f32 %v317, %v451
        %v574 = vmul.f32 %v318, %v456
        %v575 = vmul.f32 %v319, %v456
        %v576 = vmul.f32 %v320, %v461
        %v577 = vmul.f32 %v321, %v461
        %v578 = vmul.f32 %v322, %v466
        %v579 = vmul.f32 %v323, %v466
        %v580 = vmul.f32 %v324, %v471
        %v581 = vmul.f32 %v325, %v471
        %v582 = vmul.f32 %v326, %v476
        %v583 = vmul.f32 %v327, %v476
        %v584 = vmul.f32 %v328, %v481
        %v585 = vmul.f32 %v329, %v481
        %v586 = vmul.f32 %v330, %v486
        %v587 = vmul.f32 %v331, %v486
        %v588 = vmul.f32 %v332, %v491
        %v589 = vmul.f32 %v333, %v491
        %v590 = vmul.f32 %v334, %v496
        %v591 = vmul.f32 %v335, %v496
        %v592 = vmul.f32 %v336, %v501
        %v593 = vmul.f32 %v337, %v501
        %v594 = vmul.f32 %v338, %v506
        %v595 = vmul.f32 %v339, %v506
        %v596 = vmul.f32 %v340, %v511
        %v597 = vmul.f32 %v341, %v511
        %v598 = vmul.f32 %v342, %v516
        %v599 = vmul.f32 %v343, %v516
        %v600 = vmul.f32 %v344, %v521
        %v601 = vmul.f32 %v345, %v521
        %v602 = vmul.f32 %v346, %v526
        %v603 = vmul.f32 %v347, %v526
        %v604 = vmul.f32 %v348, %v531
        %v605 = vmul.f32 %v349, %v531
        %v606 = vmul.f32 %v350, %v536
        %v607 = vmul.f32 %v351, %v536
        %v608 = vmul.f32 %v352, %v541
        %v609 = vmul.f32 %v353, %v541
        %v610 = vmul.f32 %v354, %v546
        %v611 = vmul.f32 %v355, %v546
        %v612 = vld [vmem:[%s2] sm:$0xff]
        %v613 = vld [vmem:[%s2 + $0x8] sm:$0xff]
        %v614 = vld [vmem:[%s2 + $0x10] sm:$0xff]
        %v615 = vld [vmem:[%s2 + $0x18] sm:$0xff]
        %v616 = vld [vmem:[%s2 + $0x20] sm:$0xff]
        %v617 = vld [vmem:[%s2 + $0x28] sm:$0xff]
        %v618 = vld [vmem:[%s2 + $0x30] sm:$0xff]
        %v619 = vld [vmem:[%s2 + $0x38] sm:$0xff]
        %v620 = vld [vmem:[%s2 + $0x40] sm:$0xff]
        %v621 = vld [vmem:[%s2 + $0x48] sm:$0xff]
        %v622 = vld [vmem:[%s2 + $0x50] sm:$0xff]
        %v623 = vld [vmem:[%s2 + $0x58] sm:$0xff]
        %v624 = vld [vmem:[%s2 + $0x60] sm:$0xff]
        %v625 = vld [vmem:[%s2 + $0x68] sm:$0xff]
        %v626 = vld [vmem:[%s2 + $0x70] sm:$0xff]
        %v627 = vld [vmem:[%s2 + $0x78] sm:$0xff]
        %v628 = vld [vmem:[%s2 + $0x80] sm:$0xff]
        %v629 = vld [vmem:[%s2 + $0x88] sm:$0xff]
        %v630 = vld [vmem:[%s2 + $0x90] sm:$0xff]
        %v631 = vld [vmem:[%s2 + $0x98] sm:$0xff]
        %v632 = vld [vmem:[%s2 + $0xa0] sm:$0xff]
        %v633 = vld [vmem:[%s2 + $0xa8] sm:$0xff]
        %v634 = vld [vmem:[%s2 + $0xb0] sm:$0xff]
        %v635 = vld [vmem:[%s2 + $0xb8] sm:$0xff]
        %v636 = vld [vmem:[%s2 + $0xc0] sm:$0xff]
        %v637 = vld [vmem:[%s2 + $0xc8] sm:$0xff]
        %v638 = vld [vmem:[%s2 + $0xd0] sm:$0xff]
        %v639 = vld [vmem:[%s2 + $0xd8] sm:$0xff]
        %v640 = vld [vmem:[%s2 + $0xe0] sm:$0xff]
        %v641 = vld [vmem:[%s2 + $0xe8] sm:$0xff]
        %v642 = vld [vmem:[%s2 + $0xf0] sm:$0xff]
        %v643 = vld [vmem:[%s2 + $0xf8] sm:$0xff]
        %645 = vset.pattern.permute.xlu0 0
        %646 = vperm.xlu0 %645, %v612
        %v647 = vpop.permute.xlu0 %646
        %650 = vset.pattern.permute.xlu0 0
        %651 = vperm.xlu0 %650, %v613
        %v652 = vpop.permute.xlu0 %651
        %655 = vset.pattern.permute.xlu0 0
        %656 = vperm.xlu0 %655, %v614
        %v657 = vpop.permute.xlu0 %656
        %660 = vset.pattern.permute.xlu0 0
        %661 = vperm.xlu0 %660, %v615
        %v662 = vpop.permute.xlu0 %661
        %665 = vset.pattern.permute.xlu0 0
        %666 = vperm.xlu0 %665, %v616
        %v667 = vpop.permute.xlu0 %666
        %670 = vset.pattern.permute.xlu0 0
        %671 = vperm.xlu0 %670, %v617
        %v672 = vpop.permute.xlu0 %671
        %675 = vset.pattern.permute.xlu0 0
        %676 = vperm.xlu0 %675, %v618
        %v677 = vpop.permute.xlu0 %676
        %680 = vset.pattern.permute.xlu0 0
        %681 = vperm.xlu0 %680, %v619
        %v682 = vpop.permute.xlu0 %681
        %685 = vset.pattern.permute.xlu0 0
        %686 = vperm.xlu0 %685, %v620
        %v687 = vpop.permute.xlu0 %686
        %690 = vset.pattern.permute.xlu0 0
        %691 = vperm.xlu0 %690, %v621
        %v692 = vpop.permute.xlu0 %691
        %695 = vset.pattern.permute.xlu0 0
        %696 = vperm.xlu0 %695, %v622
        %v697 = vpop.permute.xlu0 %696
        %700 = vset.pattern.permute.xlu0 0
        %701 = vperm.xlu0 %700, %v623
        %v702 = vpop.permute.xlu0 %701
        %705 = vset.pattern.permute.xlu0 0
        %706 = vperm.xlu0 %705, %v624
        %v707 = vpop.permute.xlu0 %706
        %710 = vset.pattern.permute.xlu0 0
        %711 = vperm.xlu0 %710, %v625
        %v712 = vpop.permute.xlu0 %711
        %715 = vset.pattern.permute.xlu0 0
        %716 = vperm.xlu0 %715, %v626
        %v717 = vpop.permute.xlu0 %716
        %720 = vset.pattern.permute.xlu0 0
        %721 = vperm.xlu0 %720, %v627
        %v722 = vpop.permute.xlu0 %721
        %725 = vset.pattern.permute.xlu0 0
        %726 = vperm.xlu0 %725, %v628
        %v727 = vpop.permute.xlu0 %726
        %730 = vset.pattern.permute.xlu0 0
        %731 = vperm.xlu0 %730, %v629
        %v732 = vpop.permute.xlu0 %731
        %735 = vset.pattern.permute.xlu0 0
        %736 = vperm.xlu0 %735, %v630
        %v737 = vpop.permute.xlu0 %736
        %740 = vset.pattern.permute.xlu0 0
        %741 = vperm.xlu0 %740, %v631
        %v742 = vpop.permute.xlu0 %741
        %745 = vset.pattern.permute.xlu0 0
        %746 = vperm.xlu0 %745, %v632
        %v747 = vpop.permute.xlu0 %746
        %750 = vset.pattern.permute.xlu0 0
        %751 = vperm.xlu0 %750, %v633
        %v752 = vpop.permute.xlu0 %751
        %755 = vset.pattern.permute.xlu0 0
        %756 = vperm.xlu0 %755, %v634
        %v757 = vpop.permute.xlu0 %756
        %760 = vset.pattern.permute.xlu0 0
        %761 = vperm.xlu0 %760, %v635
        %v762 = vpop.permute.xlu0 %761
        %765 = vset.pattern.permute.xlu0 0
        %766 = vperm.xlu0 %765, %v636
        %v767 = vpop.permute.xlu0 %766
        %770 = vset.pattern.permute.xlu0 0
        %771 = vperm.xlu0 %770, %v637
        %v772 = vpop.permute.xlu0 %771
        %775 = vset.pattern.permute.xlu0 0
        %776 = vperm.xlu0 %775, %v638
        %v777 = vpop.permute.xlu0 %776
        %780 = vset.pattern.permute.xlu0 0
        %781 = vperm.xlu0 %780, %v639
        %v782 = vpop.permute.xlu0 %781
        %785 = vset.pattern.permute.xlu0 0
        %786 = vperm.xlu0 %785, %v640
        %v787 = vpop.permute.xlu0 %786
        %790 = vset.pattern.permute.xlu0 0
        %791 = vperm.xlu0 %790, %v641
        %v792 = vpop.permute.xlu0 %791
        %795 = vset.pattern.permute.xlu0 0
        %796 = vperm.xlu0 %795, %v642
        %v797 = vpop.permute.xlu0 %796
        %800 = vset.pattern.permute.xlu0 0
        %801 = vperm.xlu0 %800, %v643
        %v802 = vpop.permute.xlu0 %801
        %v804 = vadd.f32 %v548, %v647
        %v805 = vadd.f32 %v549, %v647
        %v806 = vadd.f32 %v550, %v652
        %v807 = vadd.f32 %v551, %v652
        %v808 = vadd.f32 %v552, %v657
        %v809 = vadd.f32 %v553, %v657
        %v810 = vadd.f32 %v554, %v662
        %v811 = vadd.f32 %v555, %v662
        %v812 = vadd.f32 %v556, %v667
        %v813 = vadd.f32 %v557, %v667
        %v814 = vadd.f32 %v558, %v672
        %v815 = vadd.f32 %v559, %v672
        %v816 = vadd.f32 %v560, %v677
        %v817 = vadd.f32 %v561, %v677
        %v818 = vadd.f32 %v562, %v682
        %v819 = vadd.f32 %v563, %v682
        %v820 = vadd.f32 %v564, %v687
        %v821 = vadd.f32 %v565, %v687
        %v822 = vadd.f32 %v566, %v692
        %v823 = vadd.f32 %v567, %v692
        %v824 = vadd.f32 %v568, %v697
        %v825 = vadd.f32 %v569, %v697
        %v826 = vadd.f32 %v570, %v702
        %v827 = vadd.f32 %v571, %v702
        %v828 = vadd.f32 %v572, %v707
        %v829 = vadd.f32 %v573, %v707
        %v830 = vadd.f32 %v574, %v712
        %v831 = vadd.f32 %v575, %v712
        %v832 = vadd.f32 %v576, %v717
        %v833 = vadd.f32 %v577, %v717
        %v834 = vadd.f32 %v578, %v722
        %v835 = vadd.f32 %v579, %v722
        %v836 = vadd.f32 %v580, %v727
        %v837 = vadd.f32 %v581, %v727
        %v838 = vadd.f32 %v582, %v732
        %v839 = vadd.f32 %v583, %v732
        %v840 = vadd.f32 %v584, %v737
        %v841 = vadd.f32 %v585, %v737
        %v842 = vadd.f32 %v586, %v742
        %v843 = vadd.f32 %v587, %v742
        %v844 = vadd.f32 %v588, %v747
        %v845 = vadd.f32 %v589, %v747
        %v846 = vadd.f32 %v590, %v752
        %v847 = vadd.f32 %v591, %v752
        %v848 = vadd.f32 %v592, %v757
        %v849 = vadd.f32 %v593, %v757
        %v850 = vadd.f32 %v594, %v762
        %v851 = vadd.f32 %v595, %v762
        %v852 = vadd.f32 %v596, %v767
        %v853 = vadd.f32 %v597, %v767
        %v854 = vadd.f32 %v598, %v772
        %v855 = vadd.f32 %v599, %v772
        %v856 = vadd.f32 %v600, %v777
        %v857 = vadd.f32 %v601, %v777
        %v858 = vadd.f32 %v602, %v782
        %v859 = vadd.f32 %v603, %v782
        %v860 = vadd.f32 %v604, %v787
        %v861 = vadd.f32 %v605, %v787
        %v862 = vadd.f32 %v606, %v792
        %v863 = vadd.f32 %v607, %v792
        %v864 = vadd.f32 %v608, %v797
        %v865 = vadd.f32 %v609, %v797
        %v866 = vadd.f32 %v610, %v802
        %v867 = vadd.f32 %v611, %v802
        %v868 = vmax.f32 %v804, 0.0
        %v869 = vmax.f32 %v805, 0.0
        %v870 = vmax.f32 %v806, 0.0
        %v871 = vmax.f32 %v807, 0.0
        %v872 = vmax.f32 %v808, 0.0
        %v873 = vmax.f32 %v809, 0.0
        %v874 = vmax.f32 %v810, 0.0
        %v875 = vmax.f32 %v811, 0.0
        %v876 = vmax.f32 %v812, 0.0
        %v877 = vmax.f32 %v813, 0.0
        %v878 = vmax.f32 %v814, 0.0
        %v879 = vmax.f32 %v815, 0.0
        %v880 = vmax.f32 %v816, 0.0
        %v881 = vmax.f32 %v817, 0.0
        %v882 = vmax.f32 %v818, 0.0
        %v883 = vmax.f32 %v819, 0.0
        %v884 = vmax.f32 %v820, 0.0
        %v885 = vmax.f32 %v821, 0.0
        %v886 = vmax.f32 %v822, 0.0
        %v887 = vmax.f32 %v823, 0.0
        %v888 = vmax.f32 %v824, 0.0
        %v889 = vmax.f32 %v825, 0.0
        %v890 = vmax.f32 %v826, 0.0
        %v891 = vmax.f32 %v827, 0.0
        %v892 = vmax.f32 %v828, 0.0
        %v893 = vmax.f32 %v829, 0.0
        %v894 = vmax.f32 %v830, 0.0
        %v895 = vmax.f32 %v831, 0.0
        %v896 = vmax.f32 %v832, 0.0
        %v897 = vmax.f32 %v833, 0.0
        %v898 = vmax.f32 %v834, 0.0
        %v899 = vmax.f32 %v835, 0.0
        %v900 = vmax.f32 %v836, 0.0
        %v901 = vmax.f32 %v837, 0.0
        %v902 = vmax.f32 %v838, 0.0
        %v903 = vmax.f32 %v839, 0.0
        %v904 = vmax.f32 %v840, 0.0
        %v905 = vmax.f32 %v841, 0.0
        %v906 = vmax.f32 %v842, 0.0
        %v907 = vmax.f32 %v843, 0.0
        %v908 = vmax.f32 %v844, 0.0
        %v909 = vmax.f32 %v845, 0.0
        %v910 = vmax.f32 %v846, 0.0
        %v911 = vmax.f32 %v847, 0.0
        %v912 = vmax.f32 %v848, 0.0
        %v913 = vmax.f32 %v849, 0.0
        %v914 = vmax.f32 %v850, 0.0
        %v915 = vmax.f32 %v851, 0.0
        %v916 = vmax.f32 %v852, 0.0
        %v917 = vmax.f32 %v853, 0.0
        %v918 = vmax.f32 %v854, 0.0
        %v919 = vmax.f32 %v855, 0.0
        %v920 = vmax.f32 %v856, 0.0
        %v921 = vmax.f32 %v857, 0.0
        %v922 = vmax.f32 %v858, 0.0
        %v923 = vmax.f32 %v859, 0.0
        %v924 = vmax.f32 %v860, 0.0
        %v925 = vmax.f32 %v861, 0.0
        %v926 = vmax.f32 %v862, 0.0
        %v927 = vmax.f32 %v863, 0.0
        %v928 = vmax.f32 %v864, 0.0
        %v929 = vmax.f32 %v865, 0.0
        %v930 = vmax.f32 %v866, 0.0
        %v931 = vmax.f32 %v867, 0.0
        %v932 = vld [vmem:[%s3] sm:$0xff]
        %v933 = vld [vmem:[%s3 + $0x8] sm:$0xff]
        %v934 = vld [vmem:[%s3 + $0x10] sm:$0xff]
        %v935 = vld [vmem:[%s3 + $0x18] sm:$0xff]
        %v936 = vld [vmem:[%s3 + $0x20] sm:$0xff]
        %v937 = vld [vmem:[%s3 + $0x28] sm:$0xff]
        %v938 = vld [vmem:[%s3 + $0x30] sm:$0xff]
        %v939 = vld [vmem:[%s3 + $0x38] sm:$0xff]
        %v940 = vld [vmem:[%s3 + $0x40] sm:$0xff]
        %v941 = vld [vmem:[%s3 + $0x48] sm:$0xff]
        %v942 = vld [vmem:[%s3 + $0x50] sm:$0xff]
        %v943 = vld [vmem:[%s3 + $0x58] sm:$0xff]
        %v944 = vld [vmem:[%s3 + $0x60] sm:$0xff]
        %v945 = vld [vmem:[%s3 + $0x68] sm:$0xff]
        %v946 = vld [vmem:[%s3 + $0x70] sm:$0xff]
        %v947 = vld [vmem:[%s3 + $0x78] sm:$0xff]
        %v948 = vld [vmem:[%s3 + $0x80] sm:$0xff]
        %v949 = vld [vmem:[%s3 + $0x88] sm:$0xff]
        %v950 = vld [vmem:[%s3 + $0x90] sm:$0xff]
        %v951 = vld [vmem:[%s3 + $0x98] sm:$0xff]
        %v952 = vld [vmem:[%s3 + $0xa0] sm:$0xff]
        %v953 = vld [vmem:[%s3 + $0xa8] sm:$0xff]
        %v954 = vld [vmem:[%s3 + $0xb0] sm:$0xff]
        %v955 = vld [vmem:[%s3 + $0xb8] sm:$0xff]
        %v956 = vld [vmem:[%s3 + $0xc0] sm:$0xff]
        %v957 = vld [vmem:[%s3 + $0xc8] sm:$0xff]
        %v958 = vld [vmem:[%s3 + $0xd0] sm:$0xff]
        %v959 = vld [vmem:[%s3 + $0xd8] sm:$0xff]
        %v960 = vld [vmem:[%s3 + $0xe0] sm:$0xff]
        %v961 = vld [vmem:[%s3 + $0xe8] sm:$0xff]
        %v962 = vld [vmem:[%s3 + $0xf0] sm:$0xff]
        %v963 = vld [vmem:[%s3 + $0xf8] sm:$0xff]
        %v964 = vpack.c.bf16 %v870, %v868
        %v965 = vpack.c.bf16 %v871, %v869
        %v966 = vpack.c.bf16 %v874, %v872
        %v967 = vpack.c.bf16 %v875, %v873
        %v968 = vpack.c.bf16 %v878, %v876
        %v969 = vpack.c.bf16 %v879, %v877
        %v970 = vpack.c.bf16 %v882, %v880
        %v971 = vpack.c.bf16 %v883, %v881
        %v972 = vpack.c.bf16 %v886, %v884
        %v973 = vpack.c.bf16 %v887, %v885
        %v974 = vpack.c.bf16 %v890, %v888
        %v975 = vpack.c.bf16 %v891, %v889
        %v976 = vpack.c.bf16 %v894, %v892
        %v977 = vpack.c.bf16 %v895, %v893
        %v978 = vpack.c.bf16 %v898, %v896
        %v979 = vpack.c.bf16 %v899, %v897
        %v980 = vpack.c.bf16 %v902, %v900
        %v981 = vpack.c.bf16 %v903, %v901
        %v982 = vpack.c.bf16 %v906, %v904
        %v983 = vpack.c.bf16 %v907, %v905
        %v984 = vpack.c.bf16 %v910, %v908
        %v985 = vpack.c.bf16 %v911, %v909
        %v986 = vpack.c.bf16 %v914, %v912
        %v987 = vpack.c.bf16 %v915, %v913
        %v988 = vpack.c.bf16 %v918, %v916
        %v989 = vpack.c.bf16 %v919, %v917
        %v990 = vpack.c.bf16 %v922, %v920
        %v991 = vpack.c.bf16 %v923, %v921
        %v992 = vpack.c.bf16 %v926, %v924
        %v993 = vpack.c.bf16 %v927, %v925
        %v994 = vpack.c.bf16 %v930, %v928
        %v995 = vpack.c.bf16 %v931, %v929
        %v996 = vld [vmem:[%s4] sm:$0xff]
        %v997 = vld [vmem:[%s4 + $0x8] sm:$0xff]
        %v998 = vld [vmem:[%s4 + $0x10] sm:$0xff]
        %v999 = vld [vmem:[%s4 + $0x18] sm:$0xff]
        %v1000 = vld [vmem:[%s4 + $0x20] sm:$0xff]
        %v1001 = vld [vmem:[%s4 + $0x28] sm:$0xff]
        %v1002 = vld [vmem:[%s4 + $0x30] sm:$0xff]
        %v1003 = vld [vmem:[%s4 + $0x38] sm:$0xff]
        %v1004 = vld [vmem:[%s4 + $0x40] sm:$0xff]
        %v1005 = vld [vmem:[%s4 + $0x48] sm:$0xff]
        %v1006 = vld [vmem:[%s4 + $0x50] sm:$0xff]
        %v1007 = vld [vmem:[%s4 + $0x58] sm:$0xff]
        %v1008 = vld [vmem:[%s4 + $0x60] sm:$0xff]
        %v1009 = vld [vmem:[%s4 + $0x68] sm:$0xff]
        %v1010 = vld [vmem:[%s4 + $0x70] sm:$0xff]
        %v1011 = vld [vmem:[%s4 + $0x78] sm:$0xff]
        %v1012 = vld [vmem:[%s4 + $0x80] sm:$0xff]
        %v1013 = vld [vmem:[%s4 + $0x88] sm:$0xff]
        %v1014 = vld [vmem:[%s4 + $0x90] sm:$0xff]
        %v1015 = vld [vmem:[%s4 + $0x98] sm:$0xff]
        %v1016 = vld [vmem:[%s4 + $0xa0] sm:$0xff]
        %v1017 = vld [vmem:[%s4 + $0xa8] sm:$0xff]
        %v1018 = vld [vmem:[%s4 + $0xb0] sm:$0xff]
        %v1019 = vld [vmem:[%s4 + $0xb8] sm:$0xff]
        %v1020 = vld [vmem:[%s4 + $0xc0] sm:$0xff]
        %v1021 = vld [vmem:[%s4 + $0xc8] sm:$0xff]
        %v1022 = vld [vmem:[%s4 + $0xd0] sm:$0xff]
        %v1023 = vld [vmem:[%s4 + $0xd8] sm:$0xff]
        %v1024 = vld [vmem:[%s4 + $0xe0] sm:$0xff]
        %v1025 = vld [vmem:[%s4 + $0xe8] sm:$0xff]
        %v1026 = vld [vmem:[%s4 + $0xf0] sm:$0xff]
        %v1027 = vld [vmem:[%s4 + $0xf8] sm:$0xff]
        %1029 = vset.pattern.permute.xlu0 0
        %1030 = vperm.xlu0 %1029, %v996
        %v1031 = vpop.permute.xlu0 %1030
        %1034 = vset.pattern.permute.xlu0 0
        %1035 = vperm.xlu0 %1034, %v997
        %v1036 = vpop.permute.xlu0 %1035
        %1039 = vset.pattern.permute.xlu0 0
        %1040 = vperm.xlu0 %1039, %v998
        %v1041 = vpop.permute.xlu0 %1040
        %1044 = vset.pattern.permute.xlu0 0
        %1045 = vperm.xlu0 %1044, %v999
        %v1046 = vpop.permute.xlu0 %1045
        %1049 = vset.pattern.permute.xlu0 0
        %1050 = vperm.xlu0 %1049, %v1000
        %v1051 = vpop.permute.xlu0 %1050
        %1054 = vset.pattern.permute.xlu0 0
        %1055 = vperm.xlu0 %1054, %v1001
        %v1056 = vpop.permute.xlu0 %1055
        %1059 = vset.pattern.permute.xlu0 0
        %1060 = vperm.xlu0 %1059, %v1002
        %v1061 = vpop.permute.xlu0 %1060
        %1064 = vset.pattern.permute.xlu0 0
        %1065 = vperm.xlu0 %1064, %v1003
        %v1066 = vpop.permute.xlu0 %1065
        %1069 = vset.pattern.permute.xlu0 0
        %1070 = vperm.xlu0 %1069, %v1004
        %v1071 = vpop.permute.xlu0 %1070
        %1074 = vset.pattern.permute.xlu0 0
        %1075 = vperm.xlu0 %1074, %v1005
        %v1076 = vpop.permute.xlu0 %1075
        %1079 = vset.pattern.permute.xlu0 0
        %1080 = vperm.xlu0 %1079, %v1006
        %v1081 = vpop.permute.xlu0 %1080
        %1084 = vset.pattern.permute.xlu0 0
        %1085 = vperm.xlu0 %1084, %v1007
        %v1086 = vpop.permute.xlu0 %1085
        %1089 = vset.pattern.permute.xlu0 0
        %1090 = vperm.xlu0 %1089, %v1008
        %v1091 = vpop.permute.xlu0 %1090
        %1094 = vset.pattern.permute.xlu0 0
        %1095 = vperm.xlu0 %1094, %v1009
        %v1096 = vpop.permute.xlu0 %1095
        %1099 = vset.pattern.permute.xlu0 0
        %1100 = vperm.xlu0 %1099, %v1010
        %v1101 = vpop.permute.xlu0 %1100
        %1104 = vset.pattern.permute.xlu0 0
        %1105 = vperm.xlu0 %1104, %v1011
        %v1106 = vpop.permute.xlu0 %1105
        %1109 = vset.pattern.permute.xlu0 0
        %1110 = vperm.xlu0 %1109, %v1012
        %v1111 = vpop.permute.xlu0 %1110
        %1114 = vset.pattern.permute.xlu0 0
        %1115 = vperm.xlu0 %1114, %v1013
        %v1116 = vpop.permute.xlu0 %1115
        %1119 = vset.pattern.permute.xlu0 0
        %1120 = vperm.xlu0 %1119, %v1014
        %v1121 = vpop.permute.xlu0 %1120
        %1124 = vset.pattern.permute.xlu0 0
        %1125 = vperm.xlu0 %1124, %v1015
        %v1126 = vpop.permute.xlu0 %1125
        %1129 = vset.pattern.permute.xlu0 0
        %1130 = vperm.xlu0 %1129, %v1016
        %v1131 = vpop.permute.xlu0 %1130
        %1134 = vset.pattern.permute.xlu0 0
        %1135 = vperm.xlu0 %1134, %v1017
        %v1136 = vpop.permute.xlu0 %1135
        %1139 = vset.pattern.permute.xlu0 0
        %1140 = vperm.xlu0 %1139, %v1018
        %v1141 = vpop.permute.xlu0 %1140
        %1144 = vset.pattern.permute.xlu0 0
        %1145 = vperm.xlu0 %1144, %v1019
        %v1146 = vpop.permute.xlu0 %1145
        %1149 = vset.pattern.permute.xlu0 0
        %1150 = vperm.xlu0 %1149, %v1020
        %v1151 = vpop.permute.xlu0 %1150
        %1154 = vset.pattern.permute.xlu0 0
        %1155 = vperm.xlu0 %1154, %v1021
        %v1156 = vpop.permute.xlu0 %1155
        %1159 = vset.pattern.permute.xlu0 0
        %1160 = vperm.xlu0 %1159, %v1022
        %v1161 = vpop.permute.xlu0 %1160
        %1164 = vset.pattern.permute.xlu0 0
        %1165 = vperm.xlu0 %1164, %v1023
        %v1166 = vpop.permute.xlu0 %1165
        %1169 = vset.pattern.permute.xlu0 0
        %1170 = vperm.xlu0 %1169, %v1024
        %v1171 = vpop.permute.xlu0 %1170
        %1174 = vset.pattern.permute.xlu0 0
        %1175 = vperm.xlu0 %1174, %v1025
        %v1176 = vpop.permute.xlu0 %1175
        %1179 = vset.pattern.permute.xlu0 0
        %1180 = vperm.xlu0 %1179, %v1026
        %v1181 = vpop.permute.xlu0 %1180
        %1184 = vset.pattern.permute.xlu0 0
        %1185 = vperm.xlu0 %1184, %v1027
        %v1186 = vpop.permute.xlu0 %1185
        %v1220 = vunpack.c.l.b16 %v932
        %v1221 = vunpack.c.h.b16 %v932
        %v1222 = vunpack.c.l.b16 %v933
        %v1223 = vunpack.c.h.b16 %v933
        %v1224 = vunpack.c.l.b16 %v934
        %v1225 = vunpack.c.h.b16 %v934
        %v1226 = vunpack.c.l.b16 %v935
        %v1227 = vunpack.c.h.b16 %v935
        %v1228 = vunpack.c.l.b16 %v936
        %v1229 = vunpack.c.h.b16 %v936
        %v1230 = vunpack.c.l.b16 %v937
        %v1231 = vunpack.c.h.b16 %v937
        %v1232 = vunpack.c.l.b16 %v938
        %v1233 = vunpack.c.h.b16 %v938
        %v1234 = vunpack.c.l.b16 %v939
        %v1235 = vunpack.c.h.b16 %v939
        %v1236 = vunpack.c.l.b16 %v940
        %v1237 = vunpack.c.h.b16 %v940
        %v1238 = vunpack.c.l.b16 %v941
        %v1239 = vunpack.c.h.b16 %v941
        %v1240 = vunpack.c.l.b16 %v942
        %v1241 = vunpack.c.h.b16 %v942
        %v1242 = vunpack.c.l.b16 %v943
        %v1243 = vunpack.c.h.b16 %v943
        %v1244 = vunpack.c.l.b16 %v944
        %v1245 = vunpack.c.h.b16 %v944
        %v1246 = vunpack.c.l.b16 %v945
        %v1247 = vunpack.c.h.b16 %v945
        %v1248 = vunpack.c.l.b16 %v946
        %v1249 = vunpack.c.h.b16 %v946
        %v1250 = vunpack.c.l.b16 %v947
        %v1251 = vunpack.c.h.b16 %v947
        %v1252 = vunpack.c.l.b16 %v948
        %v1253 = vunpack.c.h.b16 %v948
        %v1254 = vunpack.c.l.b16 %v949
        %v1255 = vunpack.c.h.b16 %v949
        %v1256 = vunpack.c.l.b16 %v950
        %v1257 = vunpack.c.h.b16 %v950
        %v1258 = vunpack.c.l.b16 %v951
        %v1259 = vunpack.c.h.b16 %v951
        %v1260 = vunpack.c.l.b16 %v952
        %v1261 = vunpack.c.h.b16 %v952
        %v1262 = vunpack.c.l.b16 %v953
        %v1263 = vunpack.c.h.b16 %v953
        %v1264 = vunpack.c.l.b16 %v954
        %v1265 = vunpack.c.h.b16 %v954
        %v1266 = vunpack.c.l.b16 %v955
        %v1267 = vunpack.c.h.b16 %v955
        %v1268 = vunpack.c.l.b16 %v956
        %v1269 = vunpack.c.h.b16 %v956
        %v1270 = vunpack.c.l.b16 %v957
        %v1271 = vunpack.c.h.b16 %v957
        %v1272 = vunpack.c.l.b16 %v958
        %v1273 = vunpack.c.h.b16 %v958
        %v1274 = vunpack.c.l.b16 %v959
        %v1275 = vunpack.c.h.b16 %v959
        %v1276 = vunpack.c.l.b16 %v960
        %v1277 = vunpack.c.h.b16 %v960
        %v1278 = vunpack.c.l.b16 %v961
        %v1279 = vunpack.c.h.b16 %v961
        %v1280 = vunpack.c.l.b16 %v962
        %v1281 = vunpack.c.h.b16 %v962
        %v1282 = vunpack.c.l.b16 %v963
        %v1283 = vunpack.c.h.b16 %v963
        %v1284 = vpack.c.b16 %v1222, %v1220
        %v1285 = vpack.c.b16 %v1223, %v1221
        %v1286 = vpack.c.b16 %v1226, %v1224
        %v1287 = vpack.c.b16 %v1227, %v1225
        %v1288 = vpack.c.b16 %v1230, %v1228
        %v1289 = vpack.c.b16 %v1231, %v1229
        %v1290 = vpack.c.b16 %v1234, %v1232
        %v1291 = vpack.c.b16 %v1235, %v1233
        %v1292 = vpack.c.b16 %v1238, %v1236
        %v1293 = vpack.c.b16 %v1239, %v1237
        %v1294 = vpack.c.b16 %v1242, %v1240
        %v1295 = vpack.c.b16 %v1243, %v1241
        %v1296 = vpack.c.b16 %v1246, %v1244
        %v1297 = vpack.c.b16 %v1247, %v1245
        %v1298 = vpack.c.b16 %v1250, %v1248
        %v1299 = vpack.c.b16 %v1251, %v1249
        %v1300 = vpack.c.b16 %v1254, %v1252
        %v1301 = vpack.c.b16 %v1255, %v1253
        %v1302 = vpack.c.b16 %v1258, %v1256
        %v1303 = vpack.c.b16 %v1259, %v1257
        %v1304 = vpack.c.b16 %v1262, %v1260
        %v1305 = vpack.c.b16 %v1263, %v1261
        %v1306 = vpack.c.b16 %v1266, %v1264
        %v1307 = vpack.c.b16 %v1267, %v1265
        %v1308 = vpack.c.b16 %v1270, %v1268
        %v1309 = vpack.c.b16 %v1271, %v1269
        %v1310 = vpack.c.b16 %v1274, %v1272
        %v1311 = vpack.c.b16 %v1275, %v1273
        %v1312 = vpack.c.b16 %v1278, %v1276
        %v1313 = vpack.c.b16 %v1279, %v1277
        %v1314 = vpack.c.b16 %v1282, %v1280
        %v1315 = vpack.c.b16 %v1283, %v1281
        %1348 = vmatpush.bf16.msra.mxu0 %v978
        %1349 = vmatpush.bf16.msra.mxu0 %v976
        %1350 = vmatpush.bf16.msra.mxu0 %v974
        %1351 = vmatpush.bf16.msra.mxu0 %v972
        %1352 = vmatpush.bf16.msra.mxu0 %v970
        %1353 = vmatpush.bf16.msra.mxu0 %v968
        %1354 = vmatpush.bf16.msra.mxu0 %v966
        %1355 = vmatpush.bf16.msra.mxu0 %v964
        %1356 = vmatmul.bf16.gmra.mxu0 %v1284
        %v1357 = vpop.f32.mrf.mxu0
        %v1358 = vadd.f32 %v1031, %v1357
        %v1359 = vpop.f32.mrf.mxu0
        %v1360 = vadd.f32 %v1036, %v1359
        %1361 = vmatmul.bf16.gmra.mxu0 %v1286
        %v1362 = vpop.f32.mrf.mxu0
        %v1363 = vadd.f32 %v1041, %v1362
        %v1364 = vpop.f32.mrf.mxu0
        %v1365 = vadd.f32 %v1046, %v1364
        %1366 = vmatmul.bf16.gmra.mxu0 %v1288
        %v1367 = vpop.f32.mrf.mxu0
        %v1368 = vadd.f32 %v1051, %v1367
        %v1369 = vpop.f32.mrf.mxu0
        %v1370 = vadd.f32 %v1056, %v1369
        %1371 = vmatmul.bf16.gmra.mxu0 %v1290
        %v1372 = vpop.f32.mrf.mxu0
        %v1373 = vadd.f32 %v1061, %v1372
        %v1374 = vpop.f32.mrf.mxu0
        %v1375 = vadd.f32 %v1066, %v1374
        %1376 = vmatmul.bf16.gmra.mxu0 %v1292
        %v1377 = vpop.f32.mrf.mxu0
        %v1378 = vadd.f32 %v1071, %v1377
        %v1379 = vpop.f32.mrf.mxu0
        %v1380 = vadd.f32 %v1076, %v1379
        %1381 = vmatmul.bf16.gmra.mxu0 %v1294
        %v1382 = vpop.f32.mrf.mxu0
        %v1383 = vadd.f32 %v1081, %v1382
        %v1384 = vpop.f32.mrf.mxu0
        %v1385 = vadd.f32 %v1086, %v1384
        %1386 = vmatmul.bf16.gmra.mxu0 %v1296
        %v1387 = vpop.f32.mrf.mxu0
        %v1388 = vadd.f32 %v1091, %v1387
        %v1389 = vpop.f32.mrf.mxu0
        %v1390 = vadd.f32 %v1096, %v1389
        %1391 = vmatmul.bf16.gmra.mxu0 %v1298
        %v1392 = vpop.f32.mrf.mxu0
        %v1393 = vadd.f32 %v1101, %v1392
        %v1394 = vpop.f32.mrf.mxu0
        %v1395 = vadd.f32 %v1106, %v1394
        %1396 = vmatmul.bf16.gmra.mxu0 %v1300
        %v1397 = vpop.f32.mrf.mxu0
        %v1398 = vadd.f32 %v1111, %v1397
        %v1399 = vpop.f32.mrf.mxu0
        %v1400 = vadd.f32 %v1116, %v1399
        %1401 = vmatmul.bf16.gmra.mxu0 %v1302
        %v1402 = vpop.f32.mrf.mxu0
        %v1403 = vadd.f32 %v1121, %v1402
        %v1404 = vpop.f32.mrf.mxu0
        %v1405 = vadd.f32 %v1126, %v1404
        %1406 = vmatmul.bf16.gmra.mxu0 %v1304
        %v1407 = vpop.f32.mrf.mxu0
        %v1408 = vadd.f32 %v1131, %v1407
        %v1409 = vpop.f32.mrf.mxu0
        %v1410 = vadd.f32 %v1136, %v1409
        %1411 = vmatmul.bf16.gmra.mxu0 %v1306
        %v1412 = vpop.f32.mrf.mxu0
        %v1413 = vadd.f32 %v1141, %v1412
        %v1414 = vpop.f32.mrf.mxu0
        %v1415 = vadd.f32 %v1146, %v1414
        %1416 = vmatmul.bf16.gmra.mxu0 %v1308
        %v1417 = vpop.f32.mrf.mxu0
        %v1418 = vadd.f32 %v1151, %v1417
        %v1419 = vpop.f32.mrf.mxu0
        %v1420 = vadd.f32 %v1156, %v1419
        %1421 = vmatmul.bf16.gmra.mxu0 %v1310
        %v1422 = vpop.f32.mrf.mxu0
        %v1423 = vadd.f32 %v1161, %v1422
        %v1424 = vpop.f32.mrf.mxu0
        %v1425 = vadd.f32 %v1166, %v1424
        %1426 = vmatmul.bf16.gmra.mxu0 %v1312
        %v1427 = vpop.f32.mrf.mxu0
        %v1428 = vadd.f32 %v1171, %v1427
        %v1429 = vpop.f32.mrf.mxu0
        %v1430 = vadd.f32 %v1176, %v1429
        %1431 = vmatmul.bf16.gmra.mxu0 %v1314
        %v1432 = vpop.f32.mrf.mxu0
        %v1433 = vadd.f32 %v1181, %v1432
        %v1434 = vpop.f32.mrf.mxu0
        %v1435 = vadd.f32 %v1186, %v1434
        %1436 = vdwg.mxu0
        %1437 = vmatpush.bf16.msra.mxu0 %v994
        %1438 = vmatpush.bf16.msra.mxu0 %v992
        %1439 = vmatpush.bf16.msra.mxu0 %v990
        %1440 = vmatpush.bf16.msra.mxu0 %v988
        %1441 = vmatpush.bf16.msra.mxu0 %v986
        %1442 = vmatpush.bf16.msra.mxu0 %v984
        %1443 = vmatpush.bf16.msra.mxu0 %v982
        %1444 = vmatpush.bf16.msra.mxu0 %v980
        %1445 = vmatmul.bf16.gmra.mxu0 %v1285
        %v1446 = vpop.f32.mrf.mxu0
        %v1447 = vadd.f32 %v1358, %v1446
        %v1448 = vpop.f32.mrf.mxu0
        %v1449 = vadd.f32 %v1360, %v1448
        %1450 = vmatmul.bf16.gmra.mxu0 %v1287
        %v1451 = vpop.f32.mrf.mxu0
        %v1452 = vadd.f32 %v1363, %v1451
        %v1453 = vpop.f32.mrf.mxu0
        %v1454 = vadd.f32 %v1365, %v1453
        %1455 = vmatmul.bf16.gmra.mxu0 %v1289
        %v1456 = vpop.f32.mrf.mxu0
        %v1457 = vadd.f32 %v1368, %v1456
        %v1458 = vpop.f32.mrf.mxu0
        %v1459 = vadd.f32 %v1370, %v1458
        %1460 = vmatmul.bf16.gmra.mxu0 %v1291
        %v1461 = vpop.f32.mrf.mxu0
        %v1462 = vadd.f32 %v1373, %v1461
        %v1463 = vpop.f32.mrf.mxu0
        %v1464 = vadd.f32 %v1375, %v1463
        %1465 = vmatmul.bf16.gmra.mxu0 %v1293
        %v1466 = vpop.f32.mrf.mxu0
        %v1467 = vadd.f32 %v1378, %v1466
        %v1468 = vpop.f32.mrf.mxu0
        %v1469 = vadd.f32 %v1380, %v1468
        %1470 = vmatmul.bf16.gmra.mxu0 %v1295
        %v1471 = vpop.f32.mrf.mxu0
        %v1472 = vadd.f32 %v1383, %v1471
        %v1473 = vpop.f32.mrf.mxu0
        %v1474 = vadd.f32 %v1385, %v1473
        %1475 = vmatmul.bf16.gmra.mxu0 %v1297
        %v1476 = vpop.f32.mrf.mxu0
        %v1477 = vadd.f32 %v1388, %v1476
        %v1478 = vpop.f32.mrf.mxu0
        %v1479 = vadd.f32 %v1390, %v1478
        %1480 = vmatmul.bf16.gmra.mxu0 %v1299
        %v1481 = vpop.f32.mrf.mxu0
        %v1482 = vadd.f32 %v1393, %v1481
        %v1483 = vpop.f32.mrf.mxu0
        %v1484 = vadd.f32 %v1395, %v1483
        %1485 = vmatmul.bf16.gmra.mxu0 %v1301
        %v1486 = vpop.f32.mrf.mxu0
        %v1487 = vadd.f32 %v1398, %v1486
        %v1488 = vpop.f32.mrf.mxu0
        %v1489 = vadd.f32 %v1400, %v1488
        %1490 = vmatmul.bf16.gmra.mxu0 %v1303
        %v1491 = vpop.f32.mrf.mxu0
        %v1492 = vadd.f32 %v1403, %v1491
        %v1493 = vpop.f32.mrf.mxu0
        %v1494 = vadd.f32 %v1405, %v1493
        %1495 = vmatmul.bf16.gmra.mxu0 %v1305
        %v1496 = vpop.f32.mrf.mxu0
        %v1497 = vadd.f32 %v1408, %v1496
        %v1498 = vpop.f32.mrf.mxu0
        %v1499 = vadd.f32 %v1410, %v1498
        %1500 = vmatmul.bf16.gmra.mxu0 %v1307
        %v1501 = vpop.f32.mrf.mxu0
        %v1502 = vadd.f32 %v1413, %v1501
        %v1503 = vpop.f32.mrf.mxu0
        %v1504 = vadd.f32 %v1415, %v1503
        %1505 = vmatmul.bf16.gmra.mxu0 %v1309
        %v1506 = vpop.f32.mrf.mxu0
        %v1507 = vadd.f32 %v1418, %v1506
        %v1508 = vpop.f32.mrf.mxu0
        %v1509 = vadd.f32 %v1420, %v1508
        %1510 = vmatmul.bf16.gmra.mxu0 %v1311
        %v1511 = vpop.f32.mrf.mxu0
        %v1512 = vadd.f32 %v1423, %v1511
        %v1513 = vpop.f32.mrf.mxu0
        %v1514 = vadd.f32 %v1425, %v1513
        %1515 = vmatmul.bf16.gmra.mxu0 %v1313
        %v1516 = vpop.f32.mrf.mxu0
        %v1517 = vadd.f32 %v1428, %v1516
        %v1518 = vpop.f32.mrf.mxu0
        %v1519 = vadd.f32 %v1430, %v1518
        %1520 = vmatmul.bf16.gmra.mxu0 %v1315
        %v1521 = vpop.f32.mrf.mxu0
        %v1522 = vadd.f32 %v1433, %v1521
        %v1523 = vpop.f32.mrf.mxu0
        %v1524 = vadd.f32 %v1435, %v1523
        %1525 = vdwg.mxu0
        %1526 = vmatpush.bf16.msra.mxu0 %v979
        %1527 = vmatpush.bf16.msra.mxu0 %v977
        %1528 = vmatpush.bf16.msra.mxu0 %v975
        %1529 = vmatpush.bf16.msra.mxu0 %v973
        %1530 = vmatpush.bf16.msra.mxu0 %v971
        %1531 = vmatpush.bf16.msra.mxu0 %v969
        %1532 = vmatpush.bf16.msra.mxu0 %v967
        %1533 = vmatpush.bf16.msra.mxu0 %v965
        %1534 = vmatmul.bf16.gmra.mxu0 %v1284
        %v1535 = vpop.f32.mrf.mxu0
        %v1536 = vadd.f32 %v1031, %v1535
        %v1537 = vpop.f32.mrf.mxu0
        %v1538 = vadd.f32 %v1036, %v1537
        %1539 = vmatmul.bf16.gmra.mxu0 %v1286
        %v1540 = vpop.f32.mrf.mxu0
        %v1541 = vadd.f32 %v1041, %v1540
        %v1542 = vpop.f32.mrf.mxu0
        %v1543 = vadd.f32 %v1046, %v1542
        %1544 = vmatmul.bf16.gmra.mxu0 %v1288
        %v1545 = vpop.f32.mrf.mxu0
        %v1546 = vadd.f32 %v1051, %v1545
        %v1547 = vpop.f32.mrf.mxu0
        %v1548 = vadd.f32 %v1056, %v1547
        %1549 = vmatmul.bf16.gmra.mxu0 %v1290
        %v1550 = vpop.f32.mrf.mxu0
        %v1551 = vadd.f32 %v1061, %v1550
        %v1552 = vpop.f32.mrf.mxu0
        %v1553 = vadd.f32 %v1066, %v1552
        %1554 = vmatmul.bf16.gmra.mxu0 %v1292
        %v1555 = vpop.f32.mrf.mxu0
        %v1556 = vadd.f32 %v1071, %v1555
        %v1557 = vpop.f32.mrf.mxu0
        %v1558 = vadd.f32 %v1076, %v1557
        %1559 = vmatmul.bf16.gmra.mxu0 %v1294
        %v1560 = vpop.f32.mrf.mxu0
        %v1561 = vadd.f32 %v1081, %v1560
        %v1562 = vpop.f32.mrf.mxu0
        %v1563 = vadd.f32 %v1086, %v1562
        %1564 = vmatmul.bf16.gmra.mxu0 %v1296
        %v1565 = vpop.f32.mrf.mxu0
        %v1566 = vadd.f32 %v1091, %v1565
        %v1567 = vpop.f32.mrf.mxu0
        %v1568 = vadd.f32 %v1096, %v1567
        %1569 = vmatmul.bf16.gmra.mxu0 %v1298
        %v1570 = vpop.f32.mrf.mxu0
        %v1571 = vadd.f32 %v1101, %v1570
        %v1572 = vpop.f32.mrf.mxu0
        %v1573 = vadd.f32 %v1106, %v1572
        %1574 = vmatmul.bf16.gmra.mxu0 %v1300
        %v1575 = vpop.f32.mrf.mxu0
        %v1576 = vadd.f32 %v1111, %v1575
        %v1577 = vpop.f32.mrf.mxu0
        %v1578 = vadd.f32 %v1116, %v1577
        %1579 = vmatmul.bf16.gmra.mxu0 %v1302
        %v1580 = vpop.f32.mrf.mxu0
        %v1581 = vadd.f32 %v1121, %v1580
        %v1582 = vpop.f32.mrf.mxu0
        %v1583 = vadd.f32 %v1126, %v1582
        %1584 = vmatmul.bf16.gmra.mxu0 %v1304
        %v1585 = vpop.f32.mrf.mxu0
        %v1586 = vadd.f32 %v1131, %v1585
        %v1587 = vpop.f32.mrf.mxu0
        %v1588 = vadd.f32 %v1136, %v1587
        %1589 = vmatmul.bf16.gmra.mxu0 %v1306
        %v1590 = vpop.f32.mrf.mxu0
        %v1591 = vadd.f32 %v1141, %v1590
        %v1592 = vpop.f32.mrf.mxu0
        %v1593 = vadd.f32 %v1146, %v1592
        %1594 = vmatmul.bf16.gmra.mxu0 %v1308
        %v1595 = vpop.f32.mrf.mxu0
        %v1596 = vadd.f32 %v1151, %v1595
        %v1597 = vpop.f32.mrf.mxu0
        %v1598 = vadd.f32 %v1156, %v1597
        %1599 = vmatmul.bf16.gmra.mxu0 %v1310
        %v1600 = vpop.f32.mrf.mxu0
        %v1601 = vadd.f32 %v1161, %v1600
        %v1602 = vpop.f32.mrf.mxu0
        %v1603 = vadd.f32 %v1166, %v1602
        %1604 = vmatmul.bf16.gmra.mxu0 %v1312
        %v1605 = vpop.f32.mrf.mxu0
        %v1606 = vadd.f32 %v1171, %v1605
        %v1607 = vpop.f32.mrf.mxu0
        %v1608 = vadd.f32 %v1176, %v1607
        %1609 = vmatmul.bf16.gmra.mxu0 %v1314
        %v1610 = vpop.f32.mrf.mxu0
        %v1611 = vadd.f32 %v1181, %v1610
        %v1612 = vpop.f32.mrf.mxu0
        %v1613 = vadd.f32 %v1186, %v1612
        %1614 = vdwg.mxu0
        %1615 = vmatpush.bf16.msra.mxu0 %v995
        %1616 = vmatpush.bf16.msra.mxu0 %v993
        %1617 = vmatpush.bf16.msra.mxu0 %v991
        %1618 = vmatpush.bf16.msra.mxu0 %v989
        %1619 = vmatpush.bf16.msra.mxu0 %v987
        %1620 = vmatpush.bf16.msra.mxu0 %v985
        %1621 = vmatpush.bf16.msra.mxu0 %v983
        %1622 = vmatpush.bf16.msra.mxu0 %v981
        %1623 = vmatmul.bf16.gmra.mxu0 %v1285
        %v1624 = vpop.f32.mrf.mxu0
        %v1625 = vadd.f32 %v1536, %v1624
        %v1626 = vpop.f32.mrf.mxu0
        %v1627 = vadd.f32 %v1538, %v1626
        %1628 = vmatmul.bf16.gmra.mxu0 %v1287
        %v1629 = vpop.f32.mrf.mxu0
        %v1630 = vadd.f32 %v1541, %v1629
        %v1631 = vpop.f32.mrf.mxu0
        %v1632 = vadd.f32 %v1543, %v1631
        %1633 = vmatmul.bf16.gmra.mxu0 %v1289
        %v1634 = vpop.f32.mrf.mxu0
        %v1635 = vadd.f32 %v1546, %v1634
        %v1636 = vpop.f32.mrf.mxu0
        %v1637 = vadd.f32 %v1548, %v1636
        %1638 = vmatmul.bf16.gmra.mxu0 %v1291
        %v1639 = vpop.f32.mrf.mxu0
        %v1640 = vadd.f32 %v1551, %v1639
        %v1641 = vpop.f32.mrf.mxu0
        %v1642 = vadd.f32 %v1553, %v1641
        %1643 = vmatmul.bf16.gmra.mxu0 %v1293
        %v1644 = vpop.f32.mrf.mxu0
        %v1645 = vadd.f32 %v1556, %v1644
        %v1646 = vpop.f32.mrf.mxu0
        %v1647 = vadd.f32 %v1558, %v1646
        %1648 = vmatmul.bf16.gmra.mxu0 %v1295
        %v1649 = vpop.f32.mrf.mxu0
        %v1650 = vadd.f32 %v1561, %v1649
        %v1651 = vpop.f32.mrf.mxu0
        %v1652 = vadd.f32 %v1563, %v1651
        %1653 = vmatmul.bf16.gmra.mxu0 %v1297
        %v1654 = vpop.f32.mrf.mxu0
        %v1655 = vadd.f32 %v1566, %v1654
        %v1656 = vpop.f32.mrf.mxu0
        %v1657 = vadd.f32 %v1568, %v1656
        %1658 = vmatmul.bf16.gmra.mxu0 %v1299
        %v1659 = vpop.f32.mrf.mxu0
        %v1660 = vadd.f32 %v1571, %v1659
        %v1661 = vpop.f32.mrf.mxu0
        %v1662 = vadd.f32 %v1573, %v1661
        %1663 = vmatmul.bf16.gmra.mxu0 %v1301
        %v1664 = vpop.f32.mrf.mxu0
        %v1665 = vadd.f32 %v1576, %v1664
        %v1666 = vpop.f32.mrf.mxu0
        %v1667 = vadd.f32 %v1578, %v1666
        %1668 = vmatmul.bf16.gmra.mxu0 %v1303
        %v1669 = vpop.f32.mrf.mxu0
        %v1670 = vadd.f32 %v1581, %v1669
        %v1671 = vpop.f32.mrf.mxu0
        %v1672 = vadd.f32 %v1583, %v1671
        %1673 = vmatmul.bf16.gmra.mxu0 %v1305
        %v1674 = vpop.f32.mrf.mxu0
        %v1675 = vadd.f32 %v1586, %v1674
        %v1676 = vpop.f32.mrf.mxu0
        %v1677 = vadd.f32 %v1588, %v1676
        %1678 = vmatmul.bf16.gmra.mxu0 %v1307
        %v1679 = vpop.f32.mrf.mxu0
        %v1680 = vadd.f32 %v1591, %v1679
        %v1681 = vpop.f32.mrf.mxu0
        %v1682 = vadd.f32 %v1593, %v1681
        %1683 = vmatmul.bf16.gmra.mxu0 %v1309
        %v1684 = vpop.f32.mrf.mxu0
        %v1685 = vadd.f32 %v1596, %v1684
        %v1686 = vpop.f32.mrf.mxu0
        %v1687 = vadd.f32 %v1598, %v1686
        %1688 = vmatmul.bf16.gmra.mxu0 %v1311
        %v1689 = vpop.f32.mrf.mxu0
        %v1690 = vadd.f32 %v1601, %v1689
        %v1691 = vpop.f32.mrf.mxu0
        %v1692 = vadd.f32 %v1603, %v1691
        %1693 = vmatmul.bf16.gmra.mxu0 %v1313
        %v1694 = vpop.f32.mrf.mxu0
        %v1695 = vadd.f32 %v1606, %v1694
        %v1696 = vpop.f32.mrf.mxu0
        %v1697 = vadd.f32 %v1608, %v1696
        %1698 = vmatmul.bf16.gmra.mxu0 %v1315
        %v1699 = vpop.f32.mrf.mxu0
        %v1700 = vadd.f32 %v1611, %v1699
        %v1701 = vpop.f32.mrf.mxu0
        %v1702 = vadd.f32 %v1613, %v1701
        %1703 = vdwg.mxu0
        %v1704 = vpack.c.bf16 %v1625, %v1447
        %v1705 = vpack.c.bf16 %v1627, %v1449
        %v1706 = vpack.c.bf16 %v1630, %v1452
        %v1707 = vpack.c.bf16 %v1632, %v1454
        %v1708 = vpack.c.bf16 %v1635, %v1457
        %v1709 = vpack.c.bf16 %v1637, %v1459
        %v1710 = vpack.c.bf16 %v1640, %v1462
        %v1711 = vpack.c.bf16 %v1642, %v1464
        %v1712 = vpack.c.bf16 %v1645, %v1467
        %v1713 = vpack.c.bf16 %v1647, %v1469
        %v1714 = vpack.c.bf16 %v1650, %v1472
        %v1715 = vpack.c.bf16 %v1652, %v1474
        %v1716 = vpack.c.bf16 %v1655, %v1477
        %v1717 = vpack.c.bf16 %v1657, %v1479
        %v1718 = vpack.c.bf16 %v1660, %v1482
        %v1719 = vpack.c.bf16 %v1662, %v1484
        %v1720 = vpack.c.bf16 %v1665, %v1487
        %v1721 = vpack.c.bf16 %v1667, %v1489
        %v1722 = vpack.c.bf16 %v1670, %v1492
        %v1723 = vpack.c.bf16 %v1672, %v1494
        %v1724 = vpack.c.bf16 %v1675, %v1497
        %v1725 = vpack.c.bf16 %v1677, %v1499
        %v1726 = vpack.c.bf16 %v1680, %v1502
        %v1727 = vpack.c.bf16 %v1682, %v1504
        %v1728 = vpack.c.bf16 %v1685, %v1507
        %v1729 = vpack.c.bf16 %v1687, %v1509
        %v1730 = vpack.c.bf16 %v1690, %v1512
        %v1731 = vpack.c.bf16 %v1692, %v1514
        %v1732 = vpack.c.bf16 %v1695, %v1517
        %v1733 = vpack.c.bf16 %v1697, %v1519
        %v1734 = vpack.c.bf16 %v1700, %v1522
        %v1735 = vpack.c.bf16 %v1702, %v1524
        %1736 = vst [vmem:[%s245] sm:$0xff] %v1704
        %1737 = vst [vmem:[%s245 + $0x8] sm:$0xff] %v1705
        %1738 = vst [vmem:[%s245 + $0x10] sm:$0xff] %v1706
        %1739 = vst [vmem:[%s245 + $0x18] sm:$0xff] %v1707
        %1740 = vst [vmem:[%s245 + $0x20] sm:$0xff] %v1708
        %1741 = vst [vmem:[%s245 + $0x28] sm:$0xff] %v1709
        %1742 = vst [vmem:[%s245 + $0x30] sm:$0xff] %v1710
        %1743 = vst [vmem:[%s245 + $0x38] sm:$0xff] %v1711
        %1744 = vst [vmem:[%s245 + $0x40] sm:$0xff] %v1712
        %1745 = vst [vmem:[%s245 + $0x48] sm:$0xff] %v1713
        %1746 = vst [vmem:[%s245 + $0x50] sm:$0xff] %v1714
        %1747 = vst [vmem:[%s245 + $0x58] sm:$0xff] %v1715
        %1748 = vst [vmem:[%s245 + $0x60] sm:$0xff] %v1716
        %1749 = vst [vmem:[%s245 + $0x68] sm:$0xff] %v1717
        %1750 = vst [vmem:[%s245 + $0x70] sm:$0xff] %v1718
        %1751 = vst [vmem:[%s245 + $0x78] sm:$0xff] %v1719
        %1752 = vst [vmem:[%s245 + $0x80] sm:$0xff] %v1720
        %1753 = vst [vmem:[%s245 + $0x88] sm:$0xff] %v1721
        %1754 = vst [vmem:[%s245 + $0x90] sm:$0xff] %v1722
        %1755 = vst [vmem:[%s245 + $0x98] sm:$0xff] %v1723
        %1756 = vst [vmem:[%s245 + $0xa0] sm:$0xff] %v1724
        %1757 = vst [vmem:[%s245 + $0xa8] sm:$0xff] %v1725
        %1758 = vst [vmem:[%s245 + $0xb0] sm:$0xff] %v1726
        %1759 = vst [vmem:[%s245 + $0xb8] sm:$0xff] %v1727
        %1760 = vst [vmem:[%s245 + $0xc0] sm:$0xff] %v1728
        %1761 = vst [vmem:[%s245 + $0xc8] sm:$0xff] %v1729
        %1762 = vst [vmem:[%s245 + $0xd0] sm:$0xff] %v1730
        %1763 = vst [vmem:[%s245 + $0xd8] sm:$0xff] %v1731
        %1764 = vst [vmem:[%s245 + $0xe0] sm:$0xff] %v1732
        %1765 = vst [vmem:[%s245 + $0xe8] sm:$0xff] %v1733
        %1766 = vst [vmem:[%s245 + $0xf0] sm:$0xff] %v1734
        %1767 = vst [vmem:[%s245 + $0xf8] sm:$0xff] %v1735
        %s1768 = sand.u32 %s153, 1
        %s1769 = scalar_lea.sflag [#allocation3], %s1768
        %s1770 = sand.u32 %s153, 1
        %s1771 = smul.addr %s1770, 256
        %s1772 = scalar_lea.vmem [#allocation2], %s1771
        // Predicated region
        $region41: #{tpu_custom_call.1} parent=39 // pred_check
          %p1773 = pneg %p163
        $region42: #{tpu_custom_call.1} parent=39 // pred_check_branch
          %1775 = sbr.rel (%p1773) target = $region44
        $region43: #{tpu_custom_call.1} parent=39 // pred_region
          %s1776 = smul.u32 32, %s23
          %s1777 = smul.u32 2, %s24
          %1779 = vsyncadd %s1769, 0
          %s1780 = smul.addr %s1776, 2
          %s1781 = sadd.s32 %s1777, %s1780
          %s1782 = smul.addr %s1781, 4
          %s1783 = scalar_lea.hbm %s5, %s1782
          %s1784 = sshll.u32 %s1772, 4
          %s1785 = int_to_ptr.vmem [resolvable:$true] %s1784
          %s1786 = sshll.u32 %s1783, 4
          %s1787 = int_to_ptr.hbm [resolvable:$true] %s1786
          %1792 = dma.vmem_to_hbm [thread:$0]  %s1785, 4096, %s1787, %s1769, 128, 128, 8
        $region44: #{tpu_custom_call.1} parent=39 // pred_fallthru
          _
      $region40: #{tpu_custom_call.1} parent=5 // pred_fallthru
        _
      %p1793 = scmp.le.s32.totalorder 2, %s14
      // Predicated region
      $region45: #{tpu_custom_call.1} parent=5 // pred_check
        %p1794 = pneg %p1793
      $region46: #{tpu_custom_call.1} parent=5 // pred_check_branch
        %1796 = sbr.rel (%p1794) target = $region48
      $region47: #{tpu_custom_call.1} parent=5 // pred_region
        %s1797 = ssub.s32 %s14, 2
        // Predicated region
        $region49: #{tpu_custom_call.1} parent=47 // pred_check
          %p1798 = pneg %p169
        $region50: #{tpu_custom_call.1} parent=47 // pred_check_branch
          %1800 = sbr.rel (%p1798) target = $region52
        $region51: #{tpu_custom_call.1} parent=47 // pred_region
          %s1801 = sand.u32 %s154, 1
          %s1802 = scalar_lea.sflag [#allocation3], %s1801
          %s1803 = sand.u32 %s154, 1
          %s1804 = smul.addr %s1803, 256
          %s1805 = scalar_lea.vmem [#allocation2], %s1804
          %1807 = dma.done %s1802, 4096
        $region52: #{tpu_custom_call.1} parent=47 // pred_fallthru
          _
      $region48: #{tpu_custom_call.1} parent=5 // pred_fallthru
        _
    $region6: #{tpu_custom_call.1} parent=1 // loop_footer
      %s18 = sadd.s32 1, %s14
    $region7: #{tpu_custom_call.1} parent=1 // loop_footer_branch
      %13 = sbr.rel target = $region3
    $region8: #{tpu_custom_call.1} parent=1 // loop_exit
      _
    %1808 = vsyncpa [#allocation3], 1
    %s1809 = scalar_lea.sflag [#allocation3], 1
    %1810 = vsyncpa %s1809, 1

</llo_original>
